<compile_context>
chip_gen: v7x
topology: tpu7x:2x2x1
jax: 0.10.0
libtpu: 0.0.40
codegen_flags: <defaults>
</compile_context>

<pallas_src>
from functools import partial

import jax
import jax.numpy as jnp
from jax import lax
from jax.experimental import pallas as pl
from jax.experimental.pallas import tpu as pltpu


def basic_block_kernel(x_ref, w1_ref, s1_ref, b1_ref, w2_ref, s2_ref, b2_ref,
                       out_ref, *, H, W, C):
    """One batch element. x_ref/out_ref: (H, W*C); w*_ref: (9*W*C, W*C) bf16;
    s*/b*: (1, W*C) folded BN scale/bias (f32, channel vector tiled over W)."""
    L = W * C
    x = x_ref[...]                                   # (H, L) f32; also residual

    zrow = jnp.zeros((1, L), jnp.float32)            # H-halo (one zero row)
    zcol = jnp.zeros((H, C), jnp.float32)            # W-halo (C zero lanes)

    def h_band(src, ky):
        # rows [ky-1, ky-1+H) of the logically zero-padded (in H) src
        if ky == 0:
            return jnp.concatenate([zrow, src[:H - 1, :]], axis=0)
        if ky == 2:
            return jnp.concatenate([src[1:, :], zrow], axis=0)
        return src

    def w_shift(band, kx):
        # lane shift by (kx-1)*C with zero fill: slot w picks input column w+kx-1
        if kx == 0:
            return jnp.concatenate([zcol, band[:, :L - C]], axis=1)
        if kx == 2:
            return jnp.concatenate([band[:, C:], zcol], axis=1)
        return band

    def im2col(src):
        # pack the 9 taps along the contraction axis -> (H, 9*L) bf16
        parts = []
        for ky in range(3):
            band = h_band(src, ky)                   # built once per ky
            for kx in range(3):
                parts.append(w_shift(band, kx))
        return jnp.concatenate(parts, axis=1).astype(jnp.bfloat16)

    # ---- conv1 (single MXU matmul) + folded bn1 + relu ----
    a1 = jnp.dot(im2col(x), w1_ref[...], preferred_element_type=jnp.float32)
    y1 = jnp.maximum(a1 * s1_ref[...] + b1_ref[...], 0.0)     # (H, L) f32

    # ---- conv2 (single MXU matmul) + folded bn2 ----
    a2 = jnp.dot(im2col(y1), w2_ref[...], preferred_element_type=jnp.float32)
    y2 = a2 * s2_ref[...] + b2_ref[...]

    # ---- residual add + relu, lane-dense full-width store ----
    out_ref[...] = jnp.maximum(y2 + x, 0.0).astype(out_ref.dtype)


def _fold_bn(gamma, beta, mean, var, Wdim, eps):
    inv = gamma / jnp.sqrt(var + eps)
    scale = jnp.tile(inv, Wdim).reshape(1, -1).astype(jnp.float32)
    bias = jnp.tile(beta - mean * inv, Wdim).reshape(1, -1).astype(jnp.float32)
    return scale, bias


def _make_big_w(w_hwio, Wdim):
    """(3,3,Cin,Cout) HWIO -> (9*W*Cin, W*Cout) block-diagonal bf16 weight."""
    eye = jnp.eye(Wdim, dtype=jnp.float32)
    blocks = [jnp.kron(eye, w_hwio[ky, kx].astype(jnp.float32))
              for ky in range(3) for kx in range(3)]
    return jnp.concatenate(blocks, axis=0).astype(jnp.bfloat16)


def basic_block_nhwc(x_nhwc, w1, g1, be1, m1, v1, w2, g2, be2, m2, v2,
                     eps=1e-5):
    """x_nhwc: (N,H,W,Cin); w*: (3,3,Cin,C) HWIO; bn params: (C,)."""
    N, H, W, Cin = x_nhwc.shape
    C = w1.shape[-1]
    assert Cin == C, "residual add requires inplanes == planes (downsample=None)"
    L = W * C
    assert L % 128 == 0, "lane-dense path expects W*C to be a multiple of 128"

    s1, b1 = _fold_bn(g1, be1, m1, v1, W, eps)
    s2, b2 = _fold_bn(g2, be2, m2, v2, W, eps)
    bw1 = _make_big_w(w1, W)
    bw2 = _make_big_w(w2, W)

    # collapse (W, C) into the lane axis; no wrapper-side padding
    x_coll = x_nhwc.reshape(N, H, L).astype(jnp.float32)

    kernel = partial(basic_block_kernel, H=H, W=W, C=C)
    out = pl.pallas_call(
        kernel,
        out_shape=jax.ShapeDtypeStruct((N, H, L), jnp.float32),
        grid_spec=pltpu.PrefetchScalarGridSpec(
            num_scalar_prefetch=0,
            grid=(N,),
            in_specs=[
                pl.BlockSpec((None, H, L), lambda n: (n, 0, 0)),   # x (squeezed N)
                pl.BlockSpec((9 * L, L), lambda n: (0, 0)),        # big W1 (bf16)
                pl.BlockSpec((1, L), lambda n: (0, 0)),            # bn1 scale
                pl.BlockSpec((1, L), lambda n: (0, 0)),            # bn1 bias
                pl.BlockSpec((9 * L, L), lambda n: (0, 0)),        # big W2 (bf16)
                pl.BlockSpec((1, L), lambda n: (0, 0)),            # bn2 scale
                pl.BlockSpec((1, L), lambda n: (0, 0)),            # bn2 bias
            ],
            out_specs=pl.BlockSpec((None, H, L), lambda n: (n, 0, 0)),
        ),
        compiler_params=pltpu.CompilerParams(
            dimension_semantics=("parallel",)),
    )(x_coll, bw1, s1, b1, bw2, s2, b2)
    return out.reshape(N, H, W, C).astype(x_nhwc.dtype)


def basic_block_nchw(x_nchw, params):
    """PyTorch-facing wrapper: NCHW in, NCHW out."""
    x_nhwc = jnp.transpose(x_nchw, (0, 2, 3, 1))
    out_nhwc = basic_block_nhwc(x_nhwc, *params)
    return jnp.transpose(out_nhwc, (0, 3, 1, 2))


def reference_nhwc(x, w1, g1, be1, m1, v1, w2, g2, be2, m2, v2, eps=1e-5):
    """Pure-JAX reference with the same bf16 conv operands / f32 accumulation."""
    dn = lax.conv_dimension_numbers(x.shape, w1.shape, ("NHWC", "HWIO", "NHWC"))

    def conv_bf16(a, w):
        return lax.conv_general_dilated(
            a.astype(jnp.bfloat16), w.astype(jnp.bfloat16), (1, 1), "SAME",
            dimension_numbers=dn, preferred_element_type=jnp.float32)

    y = conv_bf16(x, w1)
    y = (y - m1) / jnp.sqrt(v1 + eps) * g1 + be1
    y = jnp.maximum(y, 0.0)
    y = conv_bf16(y, w2)
    y = (y - m2) / jnp.sqrt(v2 + eps) * g2 + be2
    return jnp.maximum(y + x, 0.0)


if __name__ == "__main__":
    # small, module-consistent shapes: inplanes = planes = 8, 16x16 spatial
    # (W*C = 128 -> fully lane-dense vregs and stores)
    N, C, H, W = 2, 8, 16, 16

    key = jax.random.PRNGKey(0)
    ks = jax.random.split(key, 8)
    x_nchw = jax.random.normal(ks[0], (N, C, H, W), jnp.float32)

    w1 = jax.random.normal(ks[1], (3, 3, C, C), jnp.float32) * 0.1
    w2 = jax.random.normal(ks[2], (3, 3, C, C), jnp.float32) * 0.1
    g1 = 1.0 + 0.1 * jax.random.normal(ks[3], (C,), jnp.float32)
    be1 = 0.1 * jax.random.normal(ks[4], (C,), jnp.float32)
    m1 = 0.1 * jax.random.normal(ks[5], (C,), jnp.float32)
    v1 = jnp.abs(jax.random.normal(ks[6], (C,), jnp.float32)) + 0.5
    g2 = jnp.ones((C,), jnp.float32) * 0.9
    be2 = jnp.full((C,), 0.05, jnp.float32)
    m2 = jnp.full((C,), 0.02, jnp.float32)
    v2 = jnp.abs(jax.random.normal(ks[7], (C,), jnp.float32)) + 0.5

    params = (w1, g1, be1, m1, v1, w2, g2, be2, m2, v2)

    out = basic_block_nchw(x_nchw, params)
    out = jax.block_until_ready(out)

    # correctness check against a pure-JAX reference (same bf16 conv inputs)
    x_nhwc = jnp.transpose(x_nchw, (0, 2, 3, 1))
    ref = jnp.transpose(reference_nhwc(x_nhwc, *params), (0, 3, 1, 2))
    assert out.shape == (N, C, H, W)
    assert jnp.allclose(out, ref, atol=1e-2, rtol=1e-2), "mismatch vs reference"

    print("KERNEL_OK")
</pallas_src>

<mosaic_0001>
module attributes {stable_mosaic.version = 11 : i64} {
  func.func @basic_block_kernel(%arg0: i32, %arg1: memref<1x16x128xf32, #tpu.memory_space<vmem>>, %arg2: memref<1152x128xbf16, #tpu.memory_space<vmem>>, %arg3: memref<1x128xf32, #tpu.memory_space<vmem>>, %arg4: memref<1x128xf32, #tpu.memory_space<vmem>>, %arg5: memref<1152x128xbf16, #tpu.memory_space<vmem>>, %arg6: memref<1x128xf32, #tpu.memory_space<vmem>>, %arg7: memref<1x128xf32, #tpu.memory_space<vmem>>, %arg8: memref<1x16x128xf32, #tpu.memory_space<vmem>>) attributes {dimension_semantics = [#tpu.dimension_semantics<parallel>], iteration_bounds = array<i64: 2>, scalar_prefetch = 0 : i64, scratch_operands = 0 : i64, tpu.core_type = #tpu.core_type<tc>, window_params = [{transform_indices = @transform_0, window_bounds = array<i64: 1, 16, 128>}, {pipeline_mode = #tpu.pipeline_mode<synchronous>, transform_indices = @transform_1, window_bounds = array<i64: 1152, 128>}, {pipeline_mode = #tpu.pipeline_mode<synchronous>, transform_indices = @transform_2, window_bounds = array<i64: 1, 128>}, {pipeline_mode = #tpu.pipeline_mode<synchronous>, transform_indices = @transform_3, window_bounds = array<i64: 1, 128>}, {pipeline_mode = #tpu.pipeline_mode<synchronous>, transform_indices = @transform_4, window_bounds = array<i64: 1152, 128>}, {pipeline_mode = #tpu.pipeline_mode<synchronous>, transform_indices = @transform_5, window_bounds = array<i64: 1, 128>}, {pipeline_mode = #tpu.pipeline_mode<synchronous>, transform_indices = @transform_6, window_bounds = array<i64: 1, 128>}, {transform_indices = @transform_7, window_bounds = array<i64: 1, 16, 128>}]} {
    %c0 = arith.constant 0 : index
    %c0_0 = arith.constant 0 : index
    %c0_1 = arith.constant 0 : index
    %0 = vector.load %arg1[%c0, %c0_0, %c0_1] : memref<1x16x128xf32, #tpu.memory_space<vmem>>, vector<1x16x128xf32>
    %1 = vector.shape_cast %0 : vector<1x16x128xf32> to vector<16x128xf32>
    %cst = arith.constant 0.000000e+00 : f32
    %2 = vector.broadcast %cst : f32 to vector<1x128xf32>
    %cst_2 = arith.constant 0.000000e+00 : f32
    %3 = vector.broadcast %cst_2 : f32 to vector<16x8xf32>
    %4 = vector.extract_strided_slice %1 {offsets = [0, 0], sizes = [15, 128], strides = [1, 1]} : vector<16x128xf32> to vector<15x128xf32>
    %5 = tpu.concatenate %2, %4 in 0 : vector<1x128xf32>, vector<15x128xf32> -> vector<16x128xf32>
    %6 = vector.extract_strided_slice %5 {offsets = [0, 0], sizes = [16, 120], strides = [1, 1]} : vector<16x128xf32> to vector<16x120xf32>
    %7 = tpu.concatenate %3, %6 in 1 : vector<16x8xf32>, vector<16x120xf32> -> vector<16x128xf32>
    %8 = vector.extract_strided_slice %5 {offsets = [0, 8], sizes = [16, 120], strides = [1, 1]} : vector<16x128xf32> to vector<16x120xf32>
    %9 = tpu.concatenate %8, %3 in 1 : vector<16x120xf32>, vector<16x8xf32> -> vector<16x128xf32>
    %10 = vector.extract_strided_slice %1 {offsets = [0, 0], sizes = [16, 120], strides = [1, 1]} : vector<16x128xf32> to vector<16x120xf32>
    %11 = tpu.concatenate %3, %10 in 1 : vector<16x8xf32>, vector<16x120xf32> -> vector<16x128xf32>
    %12 = vector.extract_strided_slice %1 {offsets = [0, 8], sizes = [16, 120], strides = [1, 1]} : vector<16x128xf32> to vector<16x120xf32>
    %13 = tpu.concatenate %12, %3 in 1 : vector<16x120xf32>, vector<16x8xf32> -> vector<16x128xf32>
    %14 = vector.extract_strided_slice %1 {offsets = [1, 0], sizes = [15, 128], strides = [1, 1]} : vector<16x128xf32> to vector<15x128xf32>
    %15 = tpu.concatenate %14, %2 in 0 : vector<15x128xf32>, vector<1x128xf32> -> vector<16x128xf32>
    %16 = vector.extract_strided_slice %15 {offsets = [0, 0], sizes = [16, 120], strides = [1, 1]} : vector<16x128xf32> to vector<16x120xf32>
    %17 = tpu.concatenate %3, %16 in 1 : vector<16x8xf32>, vector<16x120xf32> -> vector<16x128xf32>
    %18 = vector.extract_strided_slice %15 {offsets = [0, 8], sizes = [16, 120], strides = [1, 1]} : vector<16x128xf32> to vector<16x120xf32>
    %19 = tpu.concatenate %18, %3 in 1 : vector<16x120xf32>, vector<16x8xf32> -> vector<16x128xf32>
    %20 = tpu.concatenate %7, %5, %9, %11, %1, %13, %17, %15, %19 in 1 : vector<16x128xf32>, vector<16x128xf32>, vector<16x128xf32>, vector<16x128xf32>, vector<16x128xf32>, vector<16x128xf32>, vector<16x128xf32>, vector<16x128xf32>, vector<16x128xf32> -> vector<16x1152xf32>
    %21 = arith.truncf %20 : vector<16x1152xf32> to vector<16x1152xbf16>
    %c0_3 = arith.constant 0 : index
    %c0_4 = arith.constant 0 : index
    %22 = vector.load %arg2[%c0_3, %c0_4] : memref<1152x128xbf16, #tpu.memory_space<vmem>>, vector<1152x128xbf16>
    %cst_5 = arith.constant dense<0.000000e+00> : vector<16x128xf32>
    %23 = tpu.matmul %21, %22, %cst_5 {dimension_numbers = #tpu.dot_dimension_numbers<[1], [0], [0], [1], [0, 0, 1, 1], [], []>} : vector<16x1152xbf16>, vector<1152x128xbf16>, vector<16x128xf32> -> vector<16x128xf32>
    %c0_6 = arith.constant 0 : index
    %c0_7 = arith.constant 0 : index
    %24 = vector.load %arg3[%c0_6, %c0_7] : memref<1x128xf32, #tpu.memory_space<vmem>>, vector<1x128xf32>
    %25 = vector.broadcast %24 : vector<1x128xf32> to vector<16x128xf32>
    %26 = arith.mulf %23, %25 : vector<16x128xf32>
    %c0_8 = arith.constant 0 : index
    %c0_9 = arith.constant 0 : index
    %27 = vector.load %arg4[%c0_8, %c0_9] : memref<1x128xf32, #tpu.memory_space<vmem>>, vector<1x128xf32>
    %28 = vector.broadcast %27 : vector<1x128xf32> to vector<16x128xf32>
    %29 = arith.addf %26, %28 : vector<16x128xf32>
    %cst_10 = arith.constant 0.000000e+00 : f32
    %30 = vector.broadcast %cst_10 : f32 to vector<16x128xf32>
    %31 = arith.maximumf %29, %30 : vector<16x128xf32>
    %32 = vector.extract_strided_slice %31 {offsets = [0, 0], sizes = [15, 128], strides = [1, 1]} : vector<16x128xf32> to vector<15x128xf32>
    %33 = tpu.concatenate %2, %32 in 0 : vector<1x128xf32>, vector<15x128xf32> -> vector<16x128xf32>
    %34 = vector.extract_strided_slice %33 {offsets = [0, 0], sizes = [16, 120], strides = [1, 1]} : vector<16x128xf32> to vector<16x120xf32>
    %35 = tpu.concatenate %3, %34 in 1 : vector<16x8xf32>, vector<16x120xf32> -> vector<16x128xf32>
    %36 = vector.extract_strided_slice %33 {offsets = [0, 8], sizes = [16, 120], strides = [1, 1]} : vector<16x128xf32> to vector<16x120xf32>
    %37 = tpu.concatenate %36, %3 in 1 : vector<16x120xf32>, vector<16x8xf32> -> vector<16x128xf32>
    %38 = vector.extract_strided_slice %31 {offsets = [0, 0], sizes = [16, 120], strides = [1, 1]} : vector<16x128xf32> to vector<16x120xf32>
    %39 = tpu.concatenate %3, %38 in 1 : vector<16x8xf32>, vector<16x120xf32> -> vector<16x128xf32>
    %40 = vector.extract_strided_slice %31 {offsets = [0, 8], sizes = [16, 120], strides = [1, 1]} : vector<16x128xf32> to vector<16x120xf32>
    %41 = tpu.concatenate %40, %3 in 1 : vector<16x120xf32>, vector<16x8xf32> -> vector<16x128xf32>
    %42 = vector.extract_strided_slice %31 {offsets = [1, 0], sizes = [15, 128], strides = [1, 1]} : vector<16x128xf32> to vector<15x128xf32>
    %43 = tpu.concatenate %42, %2 in 0 : vector<15x128xf32>, vector<1x128xf32> -> vector<16x128xf32>
    %44 = vector.extract_strided_slice %43 {offsets = [0, 0], sizes = [16, 120], strides = [1, 1]} : vector<16x128xf32> to vector<16x120xf32>
    %45 = tpu.concatenate %3, %44 in 1 : vector<16x8xf32>, vector<16x120xf32> -> vector<16x128xf32>
    %46 = vector.extract_strided_slice %43 {offsets = [0, 8], sizes = [16, 120], strides = [1, 1]} : vector<16x128xf32> to vector<16x120xf32>
    %47 = tpu.concatenate %46, %3 in 1 : vector<16x120xf32>, vector<16x8xf32> -> vector<16x128xf32>
    %48 = tpu.concatenate %35, %33, %37, %39, %31, %41, %45, %43, %47 in 1 : vector<16x128xf32>, vector<16x128xf32>, vector<16x128xf32>, vector<16x128xf32>, vector<16x128xf32>, vector<16x128xf32>, vector<16x128xf32>, vector<16x128xf32>, vector<16x128xf32> -> vector<16x1152xf32>
    %49 = arith.truncf %48 : vector<16x1152xf32> to vector<16x1152xbf16>
    %c0_11 = arith.constant 0 : index
    %c0_12 = arith.constant 0 : index
    %50 = vector.load %arg5[%c0_11, %c0_12] : memref<1152x128xbf16, #tpu.memory_space<vmem>>, vector<1152x128xbf16>
    %cst_13 = arith.constant dense<0.000000e+00> : vector<16x128xf32>
    %51 = tpu.matmul %49, %50, %cst_13 {dimension_numbers = #tpu.dot_dimension_numbers<[1], [0], [0], [1], [0, 0, 1, 1], [], []>} : vector<16x1152xbf16>, vector<1152x128xbf16>, vector<16x128xf32> -> vector<16x128xf32>
    %c0_14 = arith.constant 0 : index
    %c0_15 = arith.constant 0 : index
    %52 = vector.load %arg6[%c0_14, %c0_15] : memref<1x128xf32, #tpu.memory_space<vmem>>, vector<1x128xf32>
    %53 = vector.broadcast %52 : vector<1x128xf32> to vector<16x128xf32>
    %54 = arith.mulf %51, %53 : vector<16x128xf32>
    %c0_16 = arith.constant 0 : index
    %c0_17 = arith.constant 0 : index
    %55 = vector.load %arg7[%c0_16, %c0_17] : memref<1x128xf32, #tpu.memory_space<vmem>>, vector<1x128xf32>
    %56 = vector.broadcast %55 : vector<1x128xf32> to vector<16x128xf32>
    %57 = arith.addf %54, %56 : vector<16x128xf32>
    %58 = arith.addf %57, %1 : vector<16x128xf32>
    %cst_18 = arith.constant 0.000000e+00 : f32
    %59 = vector.broadcast %cst_18 : f32 to vector<16x128xf32>
    %60 = arith.maximumf %58, %59 : vector<16x128xf32>
    %c0_19 = arith.constant 0 : index
    %c0_20 = arith.constant 0 : index
    %c0_21 = arith.constant 0 : index
    %61 = vector.load %arg8[%c0_19, %c0_20, %c0_21] : memref<1x16x128xf32, #tpu.memory_space<vmem>>, vector<1x16x128xf32>
    %62 = vector.shape_cast %61 : vector<1x16x128xf32> to vector<16x128xf32>
    %63 = vector.shape_cast %60 : vector<16x128xf32> to vector<1x16x128xf32>
    tpu.vector_store %arg8[%c0_19, %c0_20, %c0_21], %63 {strides = array<i32>} : memref<1x16x128xf32, #tpu.memory_space<vmem>>, vector<1x16x128xf32>,
    return
  }
  func.func @transform_0(%arg0: i32) -> (i32, i32, i32) {
    %c0_i32 = arith.constant 0 : i32
    %c0_i32_0 = arith.constant 0 : i32
    %c0_i32_1 = arith.constant 0 : i32
    return %arg0, %c0_i32, %c0_i32_0 : i32, i32, i32
  }
  func.func @transform_1(%arg0: i32) -> (i32, i32) {
    %c0_i32 = arith.constant 0 : i32
    %c0_i32_0 = arith.constant 0 : i32
    %c0_i32_1 = arith.constant 0 : i32
    return %c0_i32, %c0_i32_0 : i32, i32
  }
  func.func @transform_2(%arg0: i32) -> (i32, i32) {
    %c0_i32 = arith.constant 0 : i32
    %c0_i32_0 = arith.constant 0 : i32
    %c0_i32_1 = arith.constant 0 : i32
    return %c0_i32, %c0_i32_0 : i32, i32
  }
  func.func @transform_3(%arg0: i32) -> (i32, i32) {
    %c0_i32 = arith.constant 0 : i32
    %c0_i32_0 = arith.constant 0 : i32
    %c0_i32_1 = arith.constant 0 : i32
    return %c0_i32, %c0_i32_0 : i32, i32
  }
  func.func @transform_4(%arg0: i32) -> (i32, i32) {
    %c0_i32 = arith.constant 0 : i32
    %c0_i32_0 = arith.constant 0 : i32
    %c0_i32_1 = arith.constant 0 : i32
    return %c0_i32, %c0_i32_0 : i32, i32
  }
  func.func @transform_5(%arg0: i32) -> (i32, i32) {
    %c0_i32 = arith.constant 0 : i32
    %c0_i32_0 = arith.constant 0 : i32
    %c0_i32_1 = arith.constant 0 : i32
    return %c0_i32, %c0_i32_0 : i32, i32
  }
  func.func @transform_6(%arg0: i32) -> (i32, i32) {
    %c0_i32 = arith.constant 0 : i32
    %c0_i32_0 = arith.constant 0 : i32
    %c0_i32_1 = arith.constant 0 : i32
    return %c0_i32, %c0_i32_0 : i32, i32
  }
  func.func @transform_7(%arg0: i32) -> (i32, i32, i32) {
    %c0_i32 = arith.constant 0 : i32
    %c0_i32_0 = arith.constant 0 : i32
    %c0_i32_1 = arith.constant 0 : i32
    return %arg0, %c0_i32, %c0_i32_0 : i32, i32, i32
  }
}

</mosaic_0001>

<llo_original>
// kernel: tpu_custom_call.1
$region0: #{tpu_custom_call.1}
  #allocation0 [shape = 'u32[]', space=smem, size = 0x4, offset = 0x4, fixed_abs, tag = 'smem constant byte address 0x4 - core index']
  #allocation1 [shape = 'u32[144,128]{1,0:T(1,128)}', space=vmem, size = 0x12000, scoped, tag = 'internal scratch']
  %s0 = inlined_call_operand.hbm [shape: f32[2,16,128], index: 0, kind: input, shape index: {}]
  %s1 = inlined_call_operand.hbm [shape: bf16[1152,128], index: 1, kind: input, shape index: {}]
  %s2 = inlined_call_operand.vmem [shape: f32[1,128], index: 2, kind: input, shape index: {}]
  %s3 = inlined_call_operand.vmem [shape: f32[1,128], index: 3, kind: input, shape index: {}]
  %s4 = inlined_call_operand.hbm [shape: bf16[1152,128], index: 4, kind: input, shape index: {}]
  %s5 = inlined_call_operand.vmem [shape: f32[1,128], index: 5, kind: input, shape index: {}]
  %s6 = inlined_call_operand.vmem [shape: f32[1,128], index: 6, kind: input, shape index: {}]
  %s7 = inlined_call_operand.hbm [shape: f32[2,16,128], index: 7, kind: output, shape index: {}]
  %s8 = sld [smem:[#allocation0]]
  $region73: #{tpu_custom_call.1} parent=0
    _
  %s10 = ssub.s32 1, %s8
  %s11 = scalar_select 0, %s10, %s8
  $region1: #{tpu_custom_call.1} parent=0
    #allocation2 [shape = 'u8[16384]{0}', space=vmem, size = 0x4000, scoped, tag = 'input window, operand 0']
    #allocation3 [shape = 's32[2]{0}', space=sflag, size = 0x8, scoped, tag = 'scoped memory for tpu_custom_call.1']
    #allocation4 [shape = 's32[2]{0}', space=sflag, size = 0x8, scoped, tag = 'scoped memory for tpu_custom_call.1']
    #allocation5 [shape = 'u8[294912]{0}', space=vmem, size = 0x48000, scoped, tag = 'input window, operand 1, single buffered']
    #allocation6 [shape = 's32[1]{0}', space=sflag, size = 0x4, scoped, tag = 'scoped memory for tpu_custom_call.1']
    #allocation7 [shape = 'u8[294912]{0}', space=vmem, size = 0x48000, scoped, tag = 'input window, operand 4, single buffered']
    #allocation8 [shape = 'u8[16384]{0}', space=vmem, size = 0x4000, scoped, tag = 'output window, operand 0']
    %12 = vsyncpa [#allocation3], 0
    %s13 = scalar_lea.sflag [#allocation3], 1
    %14 = vsyncpa %s13, 0
    %15 = vsyncpa [#allocation6], 0
    %16 = vsyncpa [#allocation4], 0
    %s17 = scalar_lea.sflag [#allocation4], 1
    %18 = vsyncpa %s17, 0
    loop: start=0, step=1, limit=4
    $region2: #{tpu_custom_call.1} parent=1 // loop_pre_header
      _
    $region3: #{tpu_custom_call.1} parent=1 // loop_header
      %s20 = sphi 0, %s24
      %p21 = scmp.ge.s32.totalorder %s20, 4
      %s30 = sphi 0, %s32
      %s33 = sphi 0, %s30
      %s34 = sphi 0, %s33
      %s50 = sphi 0, %s34
      %s54 = sphi 0, %s54
      %s56 = sphi 0, %s54
      %s57 = sphi 0, %s56
      %s71 = sphi 0, %s57
      %s75 = sphi 0, %s75
      %s77 = sphi 0, %s75
      %s78 = sphi 0, %s77
      %s92 = sphi 0, %s78
      %s96 = sphi 0, %s96
      %s98 = sphi 0, %s96
      %s99 = sphi 0, %s98
      %s113 = sphi 0, %s99
      %s117 = sphi 0, %s117
      %s119 = sphi 0, %s117
      %s120 = sphi 0, %s119
      %s134 = sphi 0, %s120
      %s138 = sphi 0, %s138
      %s140 = sphi 0, %s138
      %s141 = sphi 0, %s140
      %s155 = sphi 0, %s141
      %s159 = sphi 0, %s159
      %s161 = sphi 0, %s159
      %s162 = sphi 0, %s161
      %s176 = sphi 0, %s162
      %s182 = sphi 0, %s184
      %s185 = sphi 0, %s182
      %s186 = sphi 0, %s185
      %s202 = sphi 0, %s186
    $region4: #{tpu_custom_call.1} parent=1 // loop_header_branch
      %23 = sbr.rel (%p21) target = $region8
    $region5: #{tpu_custom_call.1} parent=1 // loop_body
      %s25 = ssub.s32 %s20, 1
      %s26 = ssub.s32 %s20, 2
      %s27 = sadd.s32 %s20, 1
      %s28 = ssub.s32 %s20, %s27
      %p29 = scmp.eq.s32.totalorder %s28, 0
      %s31 = sadd.s32 %s30, 1
      %s32 = scalar_select %p29, %s30, %s31
      %p35 = pneg %p29
      %p36 = scmp.eq.s32.totalorder %s20, 1
      %p37 = por %p35, %p36
      %p38 = scmp.ne.s32.totalorder %s30, %s33
      %p39 = scmp.eq.s32.totalorder %s20, 0
      %p40 = por %p38, %p39
      %p41 = scmp.ne.s32.totalorder %s30, %s33
      %p42 = scmp.eq.s32.totalorder %s25, 1
      %p43 = por %p41, %p42
      %p44 = scmp.ne.s32.totalorder %s33, %s34
      %p45 = scmp.eq.s32.totalorder %s25, 0
      %p46 = por %p44, %p45
      %p47 = scmp.ne.s32.totalorder %s33, %s34
      %p48 = scmp.eq.s32.totalorder %s26, 1
      %p49 = por %p47, %p48
      %p51 = scmp.ne.s32.totalorder %s34, %s50
      %p52 = scmp.eq.s32.totalorder %s26, 0
      %p53 = por %p51, %p52
      %s55 = sadd.s32 %s54, 1
      %p58 = scmp.eq.s32.totalorder %s20, 1
      %p59 = scmp.ne.s32.totalorder %s54, %s56
      %p60 = scmp.eq.s32.totalorder %s20, 0
      %p61 = por %p59, %p60
      %p62 = scmp.ne.s32.totalorder %s54, %s56
      %p63 = scmp.eq.s32.totalorder %s25, 1
      %p64 = por %p62, %p63
      %p65 = scmp.ne.s32.totalorder %s56, %s57
      %p66 = scmp.eq.s32.totalorder %s25, 0
      %p67 = por %p65, %p66
      %p68 = scmp.ne.s32.totalorder %s56, %s57
      %p69 = scmp.eq.s32.totalorder %s26, 1
      %p70 = por %p68, %p69
      %p72 = scmp.ne.s32.totalorder %s57, %s71
      %p73 = scmp.eq.s32.totalorder %s26, 0
      %p74 = por %p72, %p73
      %s76 = sadd.s32 %s75, 1
      %p79 = scmp.eq.s32.totalorder %s20, 1
      %p80 = scmp.ne.s32.totalorder %s75, %s77
      %p81 = scmp.eq.s32.totalorder %s20, 0
      %p82 = por %p80, %p81
      %p83 = scmp.ne.s32.totalorder %s75, %s77
      %p84 = scmp.eq.s32.totalorder %s25, 1
      %p85 = por %p83, %p84
      %p86 = scmp.ne.s32.totalorder %s77, %s78
      %p87 = scmp.eq.s32.totalorder %s25, 0
      %p88 = por %p86, %p87
      %p89 = scmp.ne.s32.totalorder %s77, %s78
      %p90 = scmp.eq.s32.totalorder %s26, 1
      %p91 = por %p89, %p90
      %p93 = scmp.ne.s32.totalorder %s78, %s92
      %p94 = scmp.eq.s32.totalorder %s26, 0
      %p95 = por %p93, %p94
      %s97 = sadd.s32 %s96, 1
      %p100 = scmp.eq.s32.totalorder %s20, 1
      %p101 = scmp.ne.s32.totalorder %s96, %s98
      %p102 = scmp.eq.s32.totalorder %s20, 0
      %p103 = por %p101, %p102
      %p104 = scmp.ne.s32.totalorder %s96, %s98
      %p105 = scmp.eq.s32.totalorder %s25, 1
      %p106 = por %p104, %p105
      %p107 = scmp.ne.s32.totalorder %s98, %s99
      %p108 = scmp.eq.s32.totalorder %s25, 0
      %p109 = por %p107, %p108
      %p110 = scmp.ne.s32.totalorder %s98, %s99
      %p111 = scmp.eq.s32.totalorder %s26, 1
      %p112 = por %p110, %p111
      %p114 = scmp.ne.s32.totalorder %s99, %s113
      %p115 = scmp.eq.s32.totalorder %s26, 0
      %p116 = por %p114, %p115
      %s118 = sadd.s32 %s117, 1
      %p121 = scmp.eq.s32.totalorder %s20, 1
      %p122 = scmp.ne.s32.totalorder %s117, %s119
      %p123 = scmp.eq.s32.totalorder %s20, 0
      %p124 = por %p122, %p123
      %p125 = scmp.ne.s32.totalorder %s117, %s119
      %p126 = scmp.eq.s32.totalorder %s25, 1
      %p127 = por %p125, %p126
      %p128 = scmp.ne.s32.totalorder %s119, %s120
      %p129 = scmp.eq.s32.totalorder %s25, 0
      %p130 = por %p128, %p129
      %p131 = scmp.ne.s32.totalorder %s119, %s120
      %p132 = scmp.eq.s32.totalorder %s26, 1
      %p133 = por %p131, %p132
      %p135 = scmp.ne.s32.totalorder %s120, %s134
      %p136 = scmp.eq.s32.totalorder %s26, 0
      %p137 = por %p135, %p136
      %s139 = sadd.s32 %s138, 1
      %p142 = scmp.eq.s32.totalorder %s20, 1
      %p143 = scmp.ne.s32.totalorder %s138, %s140
      %p144 = scmp.eq.s32.totalorder %s20, 0
      %p145 = por %p143, %p144
      %p146 = scmp.ne.s32.totalorder %s138, %s140
      %p147 = scmp.eq.s32.totalorder %s25, 1
      %p148 = por %p146, %p147
      %p149 = scmp.ne.s32.totalorder %s140, %s141
      %p150 = scmp.eq.s32.totalorder %s25, 0
      %p151 = por %p149, %p150
      %p152 = scmp.ne.s32.totalorder %s140, %s141
      %p153 = scmp.eq.s32.totalorder %s26, 1
      %p154 = por %p152, %p153
      %p156 = scmp.ne.s32.totalorder %s141, %s155
      %p157 = scmp.eq.s32.totalorder %s26, 0
      %p158 = por %p156, %p157
      %s160 = sadd.s32 %s159, 1
      %p163 = scmp.eq.s32.totalorder %s20, 1
      %p164 = scmp.ne.s32.totalorder %s159, %s161
      %p165 = scmp.eq.s32.totalorder %s20, 0
      %p166 = por %p164, %p165
      %p167 = scmp.ne.s32.totalorder %s159, %s161
      %p168 = scmp.eq.s32.totalorder %s25, 1
      %p169 = por %p167, %p168
      %p170 = scmp.ne.s32.totalorder %s161, %s162
      %p171 = scmp.eq.s32.totalorder %s25, 0
      %p172 = por %p170, %p171
      %p173 = scmp.ne.s32.totalorder %s161, %s162
      %p174 = scmp.eq.s32.totalorder %s26, 1
      %p175 = por %p173, %p174
      %p177 = scmp.ne.s32.totalorder %s162, %s176
      %p178 = scmp.eq.s32.totalorder %s26, 0
      %p179 = por %p177, %p178
      %s180 = ssub.s32 %s20, %s27
      %p181 = scmp.eq.s32.totalorder %s180, 0
      %s183 = sadd.s32 %s182, 1
      %s184 = scalar_select %p181, %s182, %s183
      %p187 = pneg %p181
      %p188 = scmp.eq.s32.totalorder %s20, 1
      %p189 = por %p187, %p188
      %p190 = scmp.ne.s32.totalorder %s182, %s185
      %p191 = scmp.eq.s32.totalorder %s20, 0
      %p192 = por %p190, %p191
      %p193 = scmp.ne.s32.totalorder %s182, %s185
      %p194 = scmp.eq.s32.totalorder %s25, 1
      %p195 = por %p193, %p194
      %p196 = scmp.ne.s32.totalorder %s185, %s186
      %p197 = scmp.eq.s32.totalorder %s25, 0
      %p198 = por %p196, %p197
      %p199 = scmp.ne.s32.totalorder %s185, %s186
      %p200 = scmp.eq.s32.totalorder %s26, 1
      %p201 = por %p199, %p200
      %p203 = scmp.ne.s32.totalorder %s186, %s202
      %p204 = scmp.eq.s32.totalorder %s26, 0
      %p205 = por %p203, %p204
      %p206 = scmp.le.s32.totalorder 1, %s20
      %p207 = scmp.lt.s32.totalorder %s20, 3
      %p208 = pnand %p206, %p207
      %p209 = pneg %p208
      // Predicated region
      $region9: #{tpu_custom_call.1} parent=5 // pred_check
        _
      $region10: #{tpu_custom_call.1} parent=5 // pred_check_branch
        %211 = sbr.rel (%p208) target = $region12
      $region11: #{tpu_custom_call.1} parent=5 // pred_region
        %s212 = ssub.s32 %s20, 1
        // Predicated region
        $region13: #{tpu_custom_call.1} parent=11 // pred_check
          %p213 = pneg %p67
        $region14: #{tpu_custom_call.1} parent=11 // pred_check_branch
          %215 = sbr.rel (%p213) target = $region16
        $region15: #{tpu_custom_call.1} parent=11 // pred_region
          %s217 = ssub.s32 9216, 9216
          %218 = vsyncadd [#allocation6], %s217
          %s219 = sshll.u32 [#allocation5], 4
          %s220 = int_to_ptr.vmem [resolvable:$true] %s219
          %225 = dma.hbm_to_vmem [thread:$0]  %s1, 9216, %s220, [#allocation6], 64, 64, 4
        $region16: #{tpu_custom_call.1} parent=11 // pred_fallthru
          _
        // Predicated region
        $region17: #{tpu_custom_call.1} parent=11 // pred_check
          %p226 = pneg %p88
        $region18: #{tpu_custom_call.1} parent=11 // pred_check_branch
          %228 = sbr.rel (%p226) target = $region20
        $region19: #{tpu_custom_call.1} parent=11 // pred_region
          _
        $region20: #{tpu_custom_call.1} parent=11 // pred_fallthru
          _
        // Predicated region
        $region21: #{tpu_custom_call.1} parent=11 // pred_check
          %p229 = pneg %p109
        $region22: #{tpu_custom_call.1} parent=11 // pred_check_branch
          %231 = sbr.rel (%p229) target = $region24
        $region23: #{tpu_custom_call.1} parent=11 // pred_region
          _
        $region24: #{tpu_custom_call.1} parent=11 // pred_fallthru
          _
        // Predicated region
        $region25: #{tpu_custom_call.1} parent=11 // pred_check
          %p232 = pneg %p130
        $region26: #{tpu_custom_call.1} parent=11 // pred_check_branch
          %234 = sbr.rel (%p232) target = $region28
        $region27: #{tpu_custom_call.1} parent=11 // pred_region
          %s236 = ssub.s32 9216, 9216
          %237 = vsyncadd [#allocation6], %s236
          %s238 = sshll.u32 [#allocation7], 4
          %s239 = int_to_ptr.vmem [resolvable:$true] %s238
          %244 = dma.hbm_to_vmem [thread:$0]  %s4, 9216, %s239, [#allocation6], 64, 64, 4
        $region28: #{tpu_custom_call.1} parent=11 // pred_fallthru
          _
        // Predicated region
        $region29: #{tpu_custom_call.1} parent=11 // pred_check
          %p245 = pneg %p151
        $region30: #{tpu_custom_call.1} parent=11 // pred_check_branch
          %247 = sbr.rel (%p245) target = $region32
        $region31: #{tpu_custom_call.1} parent=11 // pred_region
          _
        $region32: #{tpu_custom_call.1} parent=11 // pred_fallthru
          _
        // Predicated region
        $region33: #{tpu_custom_call.1} parent=11 // pred_check
          %p248 = pneg %p172
        $region34: #{tpu_custom_call.1} parent=11 // pred_check_branch
          %250 = sbr.rel (%p248) target = $region36
        $region35: #{tpu_custom_call.1} parent=11 // pred_region
          _
        $region36: #{tpu_custom_call.1} parent=11 // pred_fallthru
          _
      $region12: #{tpu_custom_call.1} parent=5 // pred_fallthru
        _
      %p251 = scmp.lt.s32.totalorder %s20, 2
      // Predicated region
      $region37: #{tpu_custom_call.1} parent=5 // pred_check
        %p252 = pneg %p251
      $region38: #{tpu_custom_call.1} parent=5 // pred_check_branch
        %254 = sbr.rel (%p252) target = $region40
      $region39: #{tpu_custom_call.1} parent=5 // pred_region
        // Predicated region
        $region41: #{tpu_custom_call.1} parent=39 // pred_check
          %p255 = pneg %p40
        $region42: #{tpu_custom_call.1} parent=39 // pred_check_branch
          %257 = sbr.rel (%p255) target = $region44
        $region43: #{tpu_custom_call.1} parent=39 // pred_region
          %s258 = sand.u32 %s30, 1
          %s259 = scalar_lea.sflag [#allocation3], %s258
          %s260 = sand.u32 %s30, 1
          %s261 = smul.addr %s260, 16
          %s262 = scalar_lea.vmem [#allocation2], %s261
          %s264 = ssub.s32 256, 256
          %265 = vsyncadd %s259, %s264
          %s266 = smul.addr %s20, 2
          %s267 = smul.addr %s266, 128
          %s268 = scalar_lea.hbm %s0, %s267
          %s269 = sshll.u32 %s262, 4
          %s270 = int_to_ptr.vmem [resolvable:$true] %s269
          %275 = dma.hbm_to_vmem [thread:$0]  %s268, 256, %s270, %s259, 128, 128, 8
        $region44: #{tpu_custom_call.1} parent=39 // pred_fallthru
          _
      $region40: #{tpu_custom_call.1} parent=5 // pred_fallthru
        _
      %p276 = scmp.le.s32.totalorder 1, %s20
      %p277 = scmp.lt.s32.totalorder %s20, 3
      %p278 = pnand %p276, %p277
      %p279 = pneg %p278
      // Predicated region
      $region45: #{tpu_custom_call.1} parent=5 // pred_check
        _
      $region46: #{tpu_custom_call.1} parent=5 // pred_check_branch
        %281 = sbr.rel (%p278) target = $region48
      $region47: #{tpu_custom_call.1} parent=5 // pred_region
        %s282 = ssub.s32 %s20, 1
        %s283 = sand.u32 %s33, 1
        %s284 = scalar_lea.sflag [#allocation3], %s283
        %s285 = sand.u32 %s33, 1
        %s286 = smul.addr %s285, 16
        %s287 = scalar_lea.vmem [#allocation2], %s286
        // Predicated region
        $region49: #{tpu_custom_call.1} parent=47 // pred_check
          %p288 = pneg %p46
        $region50: #{tpu_custom_call.1} parent=47 // pred_check_branch
          %290 = sbr.rel (%p288) target = $region52
        $region51: #{tpu_custom_call.1} parent=47 // pred_region
          %291 = dma.done %s284, 256
        $region52: #{tpu_custom_call.1} parent=47 // pred_fallthru
          _
        // Predicated region
        $region53: #{tpu_custom_call.1} parent=47 // pred_check
          %p292 = pneg %p67
        $region54: #{tpu_custom_call.1} parent=47 // pred_check_branch
          %294 = sbr.rel (%p292) target = $region56
        $region55: #{tpu_custom_call.1} parent=47 // pred_region
          %295 = dma.done [#allocation6], 9216
        $region56: #{tpu_custom_call.1} parent=47 // pred_fallthru
          _
        // Predicated region
        $region57: #{tpu_custom_call.1} parent=47 // pred_check
          %p296 = pneg %p130
        $region58: #{tpu_custom_call.1} parent=47 // pred_check_branch
          %298 = sbr.rel (%p296) target = $region60
        $region59: #{tpu_custom_call.1} parent=47 // pred_region
          %299 = dma.done [#allocation6], 9216
        $region60: #{tpu_custom_call.1} parent=47 // pred_fallthru
          _
        %s300 = sand.u32 %s33, 1
        %s301 = scalar_lea.sflag [#allocation3], %s300
        %s302 = sand.u32 %s33, 1
        %s303 = smul.addr %s302, 16
        %s304 = scalar_lea.vmem [#allocation2], %s303
        %p305 = pneg %p46
        %p306 = pneg %p43
        %p307 = pneg %p67
        %p308 = pneg %p64
        %p309 = pneg %p88
        %p310 = pneg %p85
        %p311 = pneg %p109
        %p312 = pneg %p106
        %p313 = pneg %p130
        %p314 = pneg %p127
        %p315 = pneg %p151
        %p316 = pneg %p148
        %p317 = pneg %p172
        %p318 = pneg %p169
        %p319 = pneg %p198
        %p320 = pneg %p195
        %s321 = sand.u32 %s185, 1
        %s322 = scalar_lea.sflag [#allocation4], %s321
        %s323 = sand.u32 %s185, 1
        %s324 = smul.addr %s323, 16
        %s325 = scalar_lea.vmem [#allocation8], %s324
        %v327 = vld [vmem:[%s287] sm:$0xff]
        %v328 = vld [vmem:[%s287 + $0x8] sm:$0xff]
        %vm331 = vcmask 1040384
        %v332 = vrot.slane %v327, 7
        %v333 = vrot.slane %v328, 7
        %v334 = vsel %vm331, %v332, %v333
        %v337 = vsel %vm331, 0.0, %v332
        %339 = vrot.lane.b32.xlu0 %v337, 8
        %v340 = vpop.permute.xlu0 %339
        %341 = vrot.lane.b32.xlu0 %v334, 8
        %v342 = vpop.permute.xlu0 %341
        %vm345 = vcmask 64512
        %v346 = vsel %vm345, 0.0, %v340
        %v347 = vsel %vm345, 0.0, %v342
        %348 = vrot.lane.b32.xlu0 %v337, 120
        %v349 = vpop.permute.xlu0 %348
        %350 = vrot.lane.b32.xlu0 %v334, 120
        %v351 = vpop.permute.xlu0 %350
        %vm354 = vcmask 982016
        %v355 = vsel %vm354, %v349, 0.0
        %v356 = vsel %vm354, %v351, 0.0
        %357 = vrot.lane.b32.xlu0 %v327, 8
        %v358 = vpop.permute.xlu0 %357
        %359 = vrot.lane.b32.xlu0 %v328, 8
        %v360 = vpop.permute.xlu0 %359
        %v363 = vsel %vm345, 0.0, %v358
        %v364 = vsel %vm345, 0.0, %v360
        %365 = vrot.lane.b32.xlu0 %v327, 120
        %v366 = vpop.permute.xlu0 %365
        %367 = vrot.lane.b32.xlu0 %v328, 120
        %v368 = vpop.permute.xlu0 %367
        %v371 = vsel %vm354, %v366, 0.0
        %v372 = vsel %vm354, %v368, 0.0
        %vm373 = vcmask 1046528
        %v374 = vrot.slane %v327, 1
        %v375 = vrot.slane %v328, 1
        %v376 = vsel %vm373, %v374, %v375
        %v379 = vsel %vm373, %v375, 0.0
        %381 = vrot.lane.b32.xlu0 %v376, 8
        %v382 = vpop.permute.xlu0 %381
        %383 = vrot.lane.b32.xlu0 %v379, 8
        %v384 = vpop.permute.xlu0 %383
        %v387 = vsel %vm345, 0.0, %v382
        %v388 = vsel %vm345, 0.0, %v384
        %389 = vrot.lane.b32.xlu0 %v376, 120
        %v390 = vpop.permute.xlu0 %389
        %391 = vrot.lane.b32.xlu0 %v379, 120
        %v392 = vpop.permute.xlu0 %391
        %v395 = vsel %vm354, %v390, 0.0
        %v396 = vsel %vm354, %v392, 0.0
        %v397 = vpack.c.bf16 %v347, %v346
        %v398 = vpack.c.bf16 %v334, %v337
        %v399 = vpack.c.bf16 %v356, %v355
        %v400 = vpack.c.bf16 %v364, %v363
        %v401 = vpack.c.bf16 %v328, %v327
        %v402 = vpack.c.bf16 %v372, %v371
        %v403 = vpack.c.bf16 %v388, %v387
        %v404 = vpack.c.bf16 %v379, %v376
        %v405 = vpack.c.bf16 %v396, %v395
        %v406 = vld [vmem:[#allocation5] sm:$0xf]
        %v407 = vld [vmem:[#allocation5 + $0x4] sm:$0xf]
        %v408 = vld [vmem:[#allocation5 + $0x8] sm:$0xf]
        %v409 = vld [vmem:[#allocation5 + $0xc] sm:$0xf]
        %v410 = vld [vmem:[#allocation5 + $0x10] sm:$0xf]
        %v411 = vld [vmem:[#allocation5 + $0x14] sm:$0xf]
        %v412 = vld [vmem:[#allocation5 + $0x18] sm:$0xf]
        %v413 = vld [vmem:[#allocation5 + $0x1c] sm:$0xf]
        %v414 = vld [vmem:[#allocation5 + $0x20] sm:$0xf]
        %v415 = vld [vmem:[#allocation5 + $0x24] sm:$0xf]
        %v416 = vld [vmem:[#allocation5 + $0x28] sm:$0xf]
        %v417 = vld [vmem:[#allocation5 + $0x2c] sm:$0xf]
        %v418 = vld [vmem:[#allocation5 + $0x30] sm:$0xf]
        %v419 = vld [vmem:[#allocation5 + $0x34] sm:$0xf]
        %v420 = vld [vmem:[#allocation5 + $0x38] sm:$0xf]
        %v421 = vld [vmem:[#allocation5 + $0x3c] sm:$0xf]
        %v422 = vld [vmem:[#allocation5 + $0x40] sm:$0xf]
        %v423 = vld [vmem:[#allocation5 + $0x44] sm:$0xf]
        %v424 = vld [vmem:[#allocation5 + $0x48] sm:$0xf]
        %v425 = vld [vmem:[#allocation5 + $0x4c] sm:$0xf]
        %v426 = vld [vmem:[#allocation5 + $0x50] sm:$0xf]
        %v427 = vld [vmem:[#allocation5 + $0x54] sm:$0xf]
        %v428 = vld [vmem:[#allocation5 + $0x58] sm:$0xf]
        %v429 = vld [vmem:[#allocation5 + $0x5c] sm:$0xf]
        %v430 = vld [vmem:[#allocation5 + $0x60] sm:$0xf]
        %v431 = vld [vmem:[#allocation5 + $0x64] sm:$0xf]
        %v432 = vld [vmem:[#allocation5 + $0x68] sm:$0xf]
        %v433 = vld [vmem:[#allocation5 + $0x6c] sm:$0xf]
        %v434 = vld [vmem:[#allocation5 + $0x70] sm:$0xf]
        %v435 = vld [vmem:[#allocation5 + $0x74] sm:$0xf]
        %v436 = vld [vmem:[#allocation5 + $0x78] sm:$0xf]
        %v437 = vld [vmem:[#allocation5 + $0x7c] sm:$0xf]
        %v438 = vld [vmem:[#allocation5 + $0x80] sm:$0xf]
        %v439 = vld [vmem:[#allocation5 + $0x84] sm:$0xf]
        %v440 = vld [vmem:[#allocation5 + $0x88] sm:$0xf]
        %v441 = vld [vmem:[#allocation5 + $0x8c] sm:$0xf]
        %v442 = vld [vmem:[#allocation5 + $0x90] sm:$0xf]
        %v443 = vld [vmem:[#allocation5 + $0x94] sm:$0xf]
        %v444 = vld [vmem:[#allocation5 + $0x98] sm:$0xf]
        %v445 = vld [vmem:[#allocation5 + $0x9c] sm:$0xf]
        %v446 = vld [vmem:[#allocation5 + $0xa0] sm:$0xf]
        %v447 = vld [vmem:[#allocation5 + $0xa4] sm:$0xf]
        %v448 = vld [vmem:[#allocation5 + $0xa8] sm:$0xf]
        %v449 = vld [vmem:[#allocation5 + $0xac] sm:$0xf]
        %v450 = vld [vmem:[#allocation5 + $0xb0] sm:$0xf]
        %v451 = vld [vmem:[#allocation5 + $0xb4] sm:$0xf]
        %v452 = vld [vmem:[#allocation5 + $0xb8] sm:$0xf]
        %v453 = vld [vmem:[#allocation5 + $0xbc] sm:$0xf]
        %v454 = vld [vmem:[#allocation5 + $0xc0] sm:$0xf]
        %v455 = vld [vmem:[#allocation5 + $0xc4] sm:$0xf]
        %v456 = vld [vmem:[#allocation5 + $0xc8] sm:$0xf]
        %v457 = vld [vmem:[#allocation5 + $0xcc] sm:$0xf]
        %v458 = vld [vmem:[#allocation5 + $0xd0] sm:$0xf]
        %v459 = vld [vmem:[#allocation5 + $0xd4] sm:$0xf]
        %v460 = vld [vmem:[#allocation5 + $0xd8] sm:$0xf]
        %v461 = vld [vmem:[#allocation5 + $0xdc] sm:$0xf]
        %v462 = vld [vmem:[#allocation5 + $0xe0] sm:$0xf]
        %v463 = vld [vmem:[#allocation5 + $0xe4] sm:$0xf]
        %v464 = vld [vmem:[#allocation5 + $0xe8] sm:$0xf]
        %v465 = vld [vmem:[#allocation5 + $0xec] sm:$0xf]
        %v466 = vld [vmem:[#allocation5 + $0xf0] sm:$0xf]
        %v467 = vld [vmem:[#allocation5 + $0xf4] sm:$0xf]
        %v468 = vld [vmem:[#allocation5 + $0xf8] sm:$0xf]
        %v469 = vld [vmem:[#allocation5 + $0xfc] sm:$0xf]
        %v470 = vld [vmem:[#allocation5 + $0x100] sm:$0xf]
        %v471 = vld [vmem:[#allocation5 + $0x104] sm:$0xf]
        %v472 = vld [vmem:[#allocation5 + $0x108] sm:$0xf]
        %v473 = vld [vmem:[#allocation5 + $0x10c] sm:$0xf]
        %v474 = vld [vmem:[#allocation5 + $0x110] sm:$0xf]
        %v475 = vld [vmem:[#allocation5 + $0x114] sm:$0xf]
        %v476 = vld [vmem:[#allocation5 + $0x118] sm:$0xf]
        %v477 = vld [vmem:[#allocation5 + $0x11c] sm:$0xf]
        %v478 = vld [vmem:[#allocation5 + $0x120] sm:$0xf]
        %v479 = vld [vmem:[#allocation5 + $0x124] sm:$0xf]
        %v480 = vld [vmem:[#allocation5 + $0x128] sm:$0xf]
        %v481 = vld [vmem:[#allocation5 + $0x12c] sm:$0xf]
        %v482 = vld [vmem:[#allocation5 + $0x130] sm:$0xf]
        %v483 = vld [vmem:[#allocation5 + $0x134] sm:$0xf]
        %v484 = vld [vmem:[#allocation5 + $0x138] sm:$0xf]
        %v485 = vld [vmem:[#allocation5 + $0x13c] sm:$0xf]
        %v486 = vld [vmem:[#allocation5 + $0x140] sm:$0xf]
        %v487 = vld [vmem:[#allocation5 + $0x144] sm:$0xf]
        %v488 = vld [vmem:[#allocation5 + $0x148] sm:$0xf]
        %v489 = vld [vmem:[#allocation5 + $0x14c] sm:$0xf]
        %v490 = vld [vmem:[#allocation5 + $0x150] sm:$0xf]
        %v491 = vld [vmem:[#allocation5 + $0x154] sm:$0xf]
        %v492 = vld [vmem:[#allocation5 + $0x158] sm:$0xf]
        %v493 = vld [vmem:[#allocation5 + $0x15c] sm:$0xf]
        %v494 = vld [vmem:[#allocation5 + $0x160] sm:$0xf]
        %v495 = vld [vmem:[#allocation5 + $0x164] sm:$0xf]
        %v496 = vld [vmem:[#allocation5 + $0x168] sm:$0xf]
        %v497 = vld [vmem:[#allocation5 + $0x16c] sm:$0xf]
        %v498 = vld [vmem:[#allocation5 + $0x170] sm:$0xf]
        %v499 = vld [vmem:[#allocation5 + $0x174] sm:$0xf]
        %v500 = vld [vmem:[#allocation5 + $0x178] sm:$0xf]
        %v501 = vld [vmem:[#allocation5 + $0x17c] sm:$0xf]
        %v502 = vld [vmem:[#allocation5 + $0x180] sm:$0xf]
        %v503 = vld [vmem:[#allocation5 + $0x184] sm:$0xf]
        %v504 = vld [vmem:[#allocation5 + $0x188] sm:$0xf]
        %v505 = vld [vmem:[#allocation5 + $0x18c] sm:$0xf]
        %v506 = vld [vmem:[#allocation5 + $0x190] sm:$0xf]
        %v507 = vld [vmem:[#allocation5 + $0x194] sm:$0xf]
        %v508 = vld [vmem:[#allocation5 + $0x198] sm:$0xf]
        %v509 = vld [vmem:[#allocation5 + $0x19c] sm:$0xf]
        %v510 = vld [vmem:[#allocation5 + $0x1a0] sm:$0xf]
        %v511 = vld [vmem:[#allocation5 + $0x1a4] sm:$0xf]
        %v512 = vld [vmem:[#allocation5 + $0x1a8] sm:$0xf]
        %v513 = vld [vmem:[#allocation5 + $0x1ac] sm:$0xf]
        %v514 = vld [vmem:[#allocation5 + $0x1b0] sm:$0xf]
        %v515 = vld [vmem:[#allocation5 + $0x1b4] sm:$0xf]
        %v516 = vld [vmem:[#allocation5 + $0x1b8] sm:$0xf]
        %v517 = vld [vmem:[#allocation5 + $0x1bc] sm:$0xf]
        %v518 = vld [vmem:[#allocation5 + $0x1c0] sm:$0xf]
        %v519 = vld [vmem:[#allocation5 + $0x1c4] sm:$0xf]
        %v520 = vld [vmem:[#allocation5 + $0x1c8] sm:$0xf]
        %v521 = vld [vmem:[#allocation5 + $0x1cc] sm:$0xf]
        %v522 = vld [vmem:[#allocation5 + $0x1d0] sm:$0xf]
        %v523 = vld [vmem:[#allocation5 + $0x1d4] sm:$0xf]
        %v524 = vld [vmem:[#allocation5 + $0x1d8] sm:$0xf]
        %v525 = vld [vmem:[#allocation5 + $0x1dc] sm:$0xf]
        %v526 = vld [vmem:[#allocation5 + $0x1e0] sm:$0xf]
        %v527 = vld [vmem:[#allocation5 + $0x1e4] sm:$0xf]
        %v528 = vld [vmem:[#allocation5 + $0x1e8] sm:$0xf]
        %v529 = vld [vmem:[#allocation5 + $0x1ec] sm:$0xf]
        %v530 = vld [vmem:[#allocation5 + $0x1f0] sm:$0xf]
        %v531 = vld [vmem:[#allocation5 + $0x1f4] sm:$0xf]
        %v532 = vld [vmem:[#allocation5 + $0x1f8] sm:$0xf]
        %v533 = vld [vmem:[#allocation5 + $0x1fc] sm:$0xf]
        %v534 = vld [vmem:[#allocation5 + $0x200] sm:$0xf]
        %v535 = vld [vmem:[#allocation5 + $0x204] sm:$0xf]
        %v536 = vld [vmem:[#allocation5 + $0x208] sm:$0xf]
        %v537 = vld [vmem:[#allocation5 + $0x20c] sm:$0xf]
        %v538 = vld [vmem:[#allocation5 + $0x210] sm:$0xf]
        %v539 = vld [vmem:[#allocation5 + $0x214] sm:$0xf]
        %v540 = vld [vmem:[#allocation5 + $0x218] sm:$0xf]
        %v541 = vld [vmem:[#allocation5 + $0x21c] sm:$0xf]
        %v542 = vld [vmem:[#allocation5 + $0x220] sm:$0xf]
        %v543 = vld [vmem:[#allocation5 + $0x224] sm:$0xf]
        %v544 = vld [vmem:[#allocation5 + $0x228] sm:$0xf]
        %v545 = vld [vmem:[#allocation5 + $0x22c] sm:$0xf]
        %v546 = vld [vmem:[#allocation5 + $0x230] sm:$0xf]
        %v547 = vld [vmem:[#allocation5 + $0x234] sm:$0xf]
        %v548 = vld [vmem:[#allocation5 + $0x238] sm:$0xf]
        %v549 = vld [vmem:[#allocation5 + $0x23c] sm:$0xf]
        %v694 = vunpack.c.l.b16 %v406
        %v695 = vunpack.c.l.b16 %v407
        %v696 = vunpack.c.l.b16 %v408
        %v697 = vunpack.c.l.b16 %v409
        %v698 = vunpack.c.l.b16 %v410
        %v699 = vunpack.c.l.b16 %v411
        %v700 = vunpack.c.l.b16 %v412
        %v701 = vunpack.c.l.b16 %v413
        %v702 = vunpack.c.l.b16 %v414
        %v703 = vunpack.c.l.b16 %v415
        %v704 = vunpack.c.l.b16 %v416
        %v705 = vunpack.c.l.b16 %v417
        %v706 = vunpack.c.l.b16 %v418
        %v707 = vunpack.c.l.b16 %v419
        %v708 = vunpack.c.l.b16 %v420
        %v709 = vunpack.c.l.b16 %v421
        %v710 = vunpack.c.l.b16 %v422
        %v711 = vunpack.c.l.b16 %v423
        %v712 = vunpack.c.l.b16 %v424
        %v713 = vunpack.c.l.b16 %v425
        %v714 = vunpack.c.l.b16 %v426
        %v715 = vunpack.c.l.b16 %v427
        %v716 = vunpack.c.l.b16 %v428
        %v717 = vunpack.c.l.b16 %v429
        %v718 = vunpack.c.l.b16 %v430
        %v719 = vunpack.c.l.b16 %v431
        %v720 = vunpack.c.l.b16 %v432
        %v721 = vunpack.c.l.b16 %v433
        %v722 = vunpack.c.l.b16 %v434
        %v723 = vunpack.c.l.b16 %v435
        %v724 = vunpack.c.l.b16 %v436
        %v725 = vunpack.c.l.b16 %v437
        %v726 = vunpack.c.l.b16 %v438
        %v727 = vunpack.c.l.b16 %v439
        %v728 = vunpack.c.l.b16 %v440
        %v729 = vunpack.c.l.b16 %v441
        %v730 = vunpack.c.l.b16 %v442
        %v731 = vunpack.c.l.b16 %v443
        %v732 = vunpack.c.l.b16 %v444
        %v733 = vunpack.c.l.b16 %v445
        %v734 = vunpack.c.l.b16 %v446
        %v735 = vunpack.c.l.b16 %v447
        %v736 = vunpack.c.l.b16 %v448
        %v737 = vunpack.c.l.b16 %v449
        %v738 = vunpack.c.l.b16 %v450
        %v739 = vunpack.c.l.b16 %v451
        %v740 = vunpack.c.l.b16 %v452
        %v741 = vunpack.c.l.b16 %v453
        %v742 = vunpack.c.l.b16 %v454
        %v743 = vunpack.c.l.b16 %v455
        %v744 = vunpack.c.l.b16 %v456
        %v745 = vunpack.c.l.b16 %v457
        %v746 = vunpack.c.l.b16 %v458
        %v747 = vunpack.c.l.b16 %v459
        %v748 = vunpack.c.l.b16 %v460
        %v749 = vunpack.c.l.b16 %v461
        %v750 = vunpack.c.l.b16 %v462
        %v751 = vunpack.c.l.b16 %v463
        %v752 = vunpack.c.l.b16 %v464
        %v753 = vunpack.c.l.b16 %v465
        %v754 = vunpack.c.l.b16 %v466
        %v755 = vunpack.c.l.b16 %v467
        %v756 = vunpack.c.l.b16 %v468
        %v757 = vunpack.c.l.b16 %v469
        %v758 = vunpack.c.l.b16 %v470
        %v759 = vunpack.c.l.b16 %v471
        %v760 = vunpack.c.l.b16 %v472
        %v761 = vunpack.c.l.b16 %v473
        %v762 = vunpack.c.l.b16 %v474
        %v763 = vunpack.c.l.b16 %v475
        %v764 = vunpack.c.l.b16 %v476
        %v765 = vunpack.c.l.b16 %v477
        %v766 = vunpack.c.l.b16 %v478
        %v767 = vunpack.c.l.b16 %v479
        %v768 = vunpack.c.l.b16 %v480
        %v769 = vunpack.c.l.b16 %v481
        %v770 = vunpack.c.l.b16 %v482
        %v771 = vunpack.c.l.b16 %v483
        %v772 = vunpack.c.l.b16 %v484
        %v773 = vunpack.c.l.b16 %v485
        %v774 = vunpack.c.l.b16 %v486
        %v775 = vunpack.c.l.b16 %v487
        %v776 = vunpack.c.l.b16 %v488
        %v777 = vunpack.c.l.b16 %v489
        %v778 = vunpack.c.l.b16 %v490
        %v779 = vunpack.c.l.b16 %v491
        %v780 = vunpack.c.l.b16 %v492
        %v781 = vunpack.c.l.b16 %v493
        %v782 = vunpack.c.l.b16 %v494
        %v783 = vunpack.c.l.b16 %v495
        %v784 = vunpack.c.l.b16 %v496
        %v785 = vunpack.c.l.b16 %v497
        %v786 = vunpack.c.l.b16 %v498
        %v787 = vunpack.c.l.b16 %v499
        %v788 = vunpack.c.l.b16 %v500
        %v789 = vunpack.c.l.b16 %v501
        %v790 = vunpack.c.l.b16 %v502
        %v791 = vunpack.c.l.b16 %v503
        %v792 = vunpack.c.l.b16 %v504
        %v793 = vunpack.c.l.b16 %v505
        %v794 = vunpack.c.l.b16 %v506
        %v795 = vunpack.c.l.b16 %v507
        %v796 = vunpack.c.l.b16 %v508
        %v797 = vunpack.c.l.b16 %v509
        %v798 = vunpack.c.l.b16 %v510
        %v799 = vunpack.c.l.b16 %v511
        %v800 = vunpack.c.l.b16 %v512
        %v801 = vunpack.c.l.b16 %v513
        %v802 = vunpack.c.l.b16 %v514
        %v803 = vunpack.c.l.b16 %v515
        %v804 = vunpack.c.l.b16 %v516
        %v805 = vunpack.c.l.b16 %v517
        %v806 = vunpack.c.l.b16 %v518
        %v807 = vunpack.c.l.b16 %v519
        %v808 = vunpack.c.l.b16 %v520
        %v809 = vunpack.c.l.b16 %v521
        %v810 = vunpack.c.l.b16 %v522
        %v811 = vunpack.c.l.b16 %v523
        %v812 = vunpack.c.l.b16 %v524
        %v813 = vunpack.c.l.b16 %v525
        %v814 = vunpack.c.l.b16 %v526
        %v815 = vunpack.c.l.b16 %v527
        %v816 = vunpack.c.l.b16 %v528
        %v817 = vunpack.c.l.b16 %v529
        %v818 = vunpack.c.l.b16 %v530
        %v819 = vunpack.c.l.b16 %v531
        %v820 = vunpack.c.l.b16 %v532
        %v821 = vunpack.c.l.b16 %v533
        %v822 = vunpack.c.l.b16 %v534
        %v823 = vunpack.c.l.b16 %v535
        %v824 = vunpack.c.l.b16 %v536
        %v825 = vunpack.c.l.b16 %v537
        %v826 = vunpack.c.l.b16 %v538
        %v827 = vunpack.c.l.b16 %v539
        %v828 = vunpack.c.l.b16 %v540
        %v829 = vunpack.c.l.b16 %v541
        %v830 = vunpack.c.l.b16 %v542
        %v831 = vunpack.c.l.b16 %v543
        %v832 = vunpack.c.l.b16 %v544
        %v833 = vunpack.c.l.b16 %v545
        %v834 = vunpack.c.l.b16 %v546
        %v835 = vunpack.c.l.b16 %v547
        %v836 = vunpack.c.l.b16 %v548
        %v837 = vunpack.c.l.b16 %v549
        %v838 = vpack.c.b16 %v695, %v694
        %v839 = vpack.c.b16 %v697, %v696
        %v840 = vpack.c.b16 %v699, %v698
        %v841 = vpack.c.b16 %v701, %v700
        %v842 = vpack.c.b16 %v703, %v702
        %v843 = vpack.c.b16 %v705, %v704
        %v844 = vpack.c.b16 %v707, %v706
        %v845 = vpack.c.b16 %v709, %v708
        %v846 = vpack.c.b16 %v711, %v710
        %v847 = vpack.c.b16 %v713, %v712
        %v848 = vpack.c.b16 %v715, %v714
        %v849 = vpack.c.b16 %v717, %v716
        %v850 = vpack.c.b16 %v719, %v718
        %v851 = vpack.c.b16 %v721, %v720
        %v852 = vpack.c.b16 %v723, %v722
        %v853 = vpack.c.b16 %v725, %v724
        %v854 = vpack.c.b16 %v727, %v726
        %v855 = vpack.c.b16 %v729, %v728
        %v856 = vpack.c.b16 %v731, %v730
        %v857 = vpack.c.b16 %v733, %v732
        %v858 = vpack.c.b16 %v735, %v734
        %v859 = vpack.c.b16 %v737, %v736
        %v860 = vpack.c.b16 %v739, %v738
        %v861 = vpack.c.b16 %v741, %v740
        %v862 = vpack.c.b16 %v743, %v742
        %v863 = vpack.c.b16 %v745, %v744
        %v864 = vpack.c.b16 %v747, %v746
        %v865 = vpack.c.b16 %v749, %v748
        %v866 = vpack.c.b16 %v751, %v750
        %v867 = vpack.c.b16 %v753, %v752
        %v868 = vpack.c.b16 %v755, %v754
        %v869 = vpack.c.b16 %v757, %v756
        %v870 = vpack.c.b16 %v759, %v758
        %v871 = vpack.c.b16 %v761, %v760
        %v872 = vpack.c.b16 %v763, %v762
        %v873 = vpack.c.b16 %v765, %v764
        %v874 = vpack.c.b16 %v767, %v766
        %v875 = vpack.c.b16 %v769, %v768
        %v876 = vpack.c.b16 %v771, %v770
        %v877 = vpack.c.b16 %v773, %v772
        %v878 = vpack.c.b16 %v775, %v774
        %v879 = vpack.c.b16 %v777, %v776
        %v880 = vpack.c.b16 %v779, %v778
        %v881 = vpack.c.b16 %v781, %v780
        %v882 = vpack.c.b16 %v783, %v782
        %v883 = vpack.c.b16 %v785, %v784
        %v884 = vpack.c.b16 %v787, %v786
        %v885 = vpack.c.b16 %v789, %v788
        %v886 = vpack.c.b16 %v791, %v790
        %v887 = vpack.c.b16 %v793, %v792
        %v888 = vpack.c.b16 %v795, %v794
        %v889 = vpack.c.b16 %v797, %v796
        %v890 = vpack.c.b16 %v799, %v798
        %v891 = vpack.c.b16 %v801, %v800
        %v892 = vpack.c.b16 %v803, %v802
        %v893 = vpack.c.b16 %v805, %v804
        %v894 = vpack.c.b16 %v807, %v806
        %v895 = vpack.c.b16 %v809, %v808
        %v896 = vpack.c.b16 %v811, %v810
        %v897 = vpack.c.b16 %v813, %v812
        %v898 = vpack.c.b16 %v815, %v814
        %v899 = vpack.c.b16 %v817, %v816
        %v900 = vpack.c.b16 %v819, %v818
        %v901 = vpack.c.b16 %v821, %v820
        %v902 = vpack.c.b16 %v823, %v822
        %v903 = vpack.c.b16 %v825, %v824
        %v904 = vpack.c.b16 %v827, %v826
        %v905 = vpack.c.b16 %v829, %v828
        %v906 = vpack.c.b16 %v831, %v830
        %v907 = vpack.c.b16 %v833, %v832
        %v908 = vpack.c.b16 %v835, %v834
        %v909 = vpack.c.b16 %v837, %v836
        %982 = vmatprep.subr.bf16.mxu0 0
        %983 = vmatpush1.bf16.msra.mxu0 %v838
        %984 = vmatprep.subr.bf16.mxu0 0
        %985 = vmatpush1.bf16.msra.mxu0 %v839
        %986 = vmatprep.subr.bf16.mxu0 0
        %987 = vmatpush1.bf16.msra.mxu0 %v840
        %988 = vmatprep.subr.bf16.mxu0 0
        %989 = vmatpush1.bf16.msra.mxu0 %v841
        %990 = vmatprep.subr.bf16.mxu0 0
        %991 = vmatpush1.bf16.msra.mxu0 %v842
        %992 = vmatprep.subr.bf16.mxu0 0
        %993 = vmatpush1.bf16.msra.mxu0 %v843
        %994 = vmatprep.subr.bf16.mxu0 0
        %995 = vmatpush1.bf16.msra.mxu0 %v844
        %996 = vmatprep.subr.bf16.mxu0 0
        %997 = vmatpush1.bf16.msra.mxu0 %v845
        %998 = vmatprep.subr.bf16.mxu0 0
        %999 = vmatpush1.bf16.msra.mxu0 %v846
        %1000 = vmatprep.subr.bf16.mxu0 0
        %1001 = vmatpush1.bf16.msra.mxu0 %v847
        %1002 = vmatprep.subr.bf16.mxu0 0
        %1003 = vmatpush1.bf16.msra.mxu0 %v848
        %1004 = vmatprep.subr.bf16.mxu0 0
        %1005 = vmatpush1.bf16.msra.mxu0 %v849
        %1006 = vmatprep.subr.bf16.mxu0 0
        %1007 = vmatpush1.bf16.msra.mxu0 %v850
        %1008 = vmatprep.subr.bf16.mxu0 0
        %1009 = vmatpush1.bf16.msra.mxu0 %v851
        %1010 = vmatprep.subr.bf16.mxu0 0
        %1011 = vmatpush1.bf16.msra.mxu0 %v852
        %1012 = vmatprep.subr.bf16.mxu0 0
        %1013 = vmatpush1.bf16.msra.mxu0 %v853
        %1014 = vmatprep.mubr.bf16.mxu0 %v398
        %1015 = vmatmul.mubr.bf16.gmra.mrb[0].mxu0 %v397
        %v1016 = vpop.f32.mrb[0].mxu0
        %v1017 = vadd.f32 0.0, %v1016
        %v1018 = vpop.f32.mrb[0].mxu0
        %v1019 = vpop.f32.mrb[0].mxu0
        %v1020 = vadd.f32 0.0, %v1019
        %v1021 = vpop.f32.mrb[0].mxu0
        %1022 = vdwg.mxu0
        %1023 = vmatprep.subr.bf16.mxu0 0
        %1024 = vmatpush1.bf16.msra.mxu0 %v854
        %1025 = vmatprep.subr.bf16.mxu0 0
        %1026 = vmatpush1.bf16.msra.mxu0 %v855
        %1027 = vmatprep.subr.bf16.mxu0 0
        %1028 = vmatpush1.bf16.msra.mxu0 %v856
        %1029 = vmatprep.subr.bf16.mxu0 0
        %1030 = vmatpush1.bf16.msra.mxu0 %v857
        %1031 = vmatprep.subr.bf16.mxu0 0
        %1032 = vmatpush1.bf16.msra.mxu0 %v858
        %1033 = vmatprep.subr.bf16.mxu0 0
        %1034 = vmatpush1.bf16.msra.mxu0 %v859
        %1035 = vmatprep.subr.bf16.mxu0 0
        %1036 = vmatpush1.bf16.msra.mxu0 %v860
        %1037 = vmatprep.subr.bf16.mxu0 0
        %1038 = vmatpush1.bf16.msra.mxu0 %v861
        %1039 = vmatprep.subr.bf16.mxu0 0
        %1040 = vmatpush1.bf16.msra.mxu0 %v862
        %1041 = vmatprep.subr.bf16.mxu0 0
        %1042 = vmatpush1.bf16.msra.mxu0 %v863
        %1043 = vmatprep.subr.bf16.mxu0 0
        %1044 = vmatpush1.bf16.msra.mxu0 %v864
        %1045 = vmatprep.subr.bf16.mxu0 0
        %1046 = vmatpush1.bf16.msra.mxu0 %v865
        %1047 = vmatprep.subr.bf16.mxu0 0
        %1048 = vmatpush1.bf16.msra.mxu0 %v866
        %1049 = vmatprep.subr.bf16.mxu0 0
        %1050 = vmatpush1.bf16.msra.mxu0 %v867
        %1051 = vmatprep.subr.bf16.mxu0 0
        %1052 = vmatpush1.bf16.msra.mxu0 %v868
        %1053 = vmatprep.subr.bf16.mxu0 0
        %1054 = vmatpush1.bf16.msra.mxu0 %v869
        %1055 = vmatprep.mubr.bf16.mxu0 %v400
        %1056 = vmatmul.mubr.bf16.gmra.mrb[0].mxu0 %v399
        %v1057 = vpop.f32.mrb[0].mxu0
        %v1058 = vadd.f32 %v1017, %v1057
        %v1059 = vpop.f32.mrb[0].mxu0
        %v1060 = vpop.f32.mrb[0].mxu0
        %v1061 = vadd.f32 %v1020, %v1060
        %v1062 = vpop.f32.mrb[0].mxu0
        %1063 = vdwg.mxu0
        %1064 = vmatprep.subr.bf16.mxu0 0
        %1065 = vmatpush1.bf16.msra.mxu0 %v870
        %1066 = vmatprep.subr.bf16.mxu0 0
        %1067 = vmatpush1.bf16.msra.mxu0 %v871
        %1068 = vmatprep.subr.bf16.mxu0 0
        %1069 = vmatpush1.bf16.msra.mxu0 %v872
        %1070 = vmatprep.subr.bf16.mxu0 0
        %1071 = vmatpush1.bf16.msra.mxu0 %v873
        %1072 = vmatprep.subr.bf16.mxu0 0
        %1073 = vmatpush1.bf16.msra.mxu0 %v874
        %1074 = vmatprep.subr.bf16.mxu0 0
        %1075 = vmatpush1.bf16.msra.mxu0 %v875
        %1076 = vmatprep.subr.bf16.mxu0 0
        %1077 = vmatpush1.bf16.msra.mxu0 %v876
        %1078 = vmatprep.subr.bf16.mxu0 0
        %1079 = vmatpush1.bf16.msra.mxu0 %v877
        %1080 = vmatprep.subr.bf16.mxu0 0
        %1081 = vmatpush1.bf16.msra.mxu0 %v878
        %1082 = vmatprep.subr.bf16.mxu0 0
        %1083 = vmatpush1.bf16.msra.mxu0 %v879
        %1084 = vmatprep.subr.bf16.mxu0 0
        %1085 = vmatpush1.bf16.msra.mxu0 %v880
        %1086 = vmatprep.subr.bf16.mxu0 0
        %1087 = vmatpush1.bf16.msra.mxu0 %v881
        %1088 = vmatprep.subr.bf16.mxu0 0
        %1089 = vmatpush1.bf16.msra.mxu0 %v882
        %1090 = vmatprep.subr.bf16.mxu0 0
        %1091 = vmatpush1.bf16.msra.mxu0 %v883
        %1092 = vmatprep.subr.bf16.mxu0 0
        %1093 = vmatpush1.bf16.msra.mxu0 %v884
        %1094 = vmatprep.subr.bf16.mxu0 0
        %1095 = vmatpush1.bf16.msra.mxu0 %v885
        %1096 = vmatprep.mubr.bf16.mxu0 %v402
        %1097 = vmatmul.mubr.bf16.gmra.mrb[0].mxu0 %v401
        %v1098 = vpop.f32.mrb[0].mxu0
        %v1099 = vadd.f32 %v1058, %v1098
        %v1100 = vpop.f32.mrb[0].mxu0
        %v1101 = vpop.f32.mrb[0].mxu0
        %v1102 = vadd.f32 %v1061, %v1101
        %v1103 = vpop.f32.mrb[0].mxu0
        %1104 = vdwg.mxu0
        %1105 = vmatprep.subr.bf16.mxu0 0
        %1106 = vmatpush1.bf16.msra.mxu0 %v886
        %1107 = vmatprep.subr.bf16.mxu0 0
        %1108 = vmatpush1.bf16.msra.mxu0 %v887
        %1109 = vmatprep.subr.bf16.mxu0 0
        %1110 = vmatpush1.bf16.msra.mxu0 %v888
        %1111 = vmatprep.subr.bf16.mxu0 0
        %1112 = vmatpush1.bf16.msra.mxu0 %v889
        %1113 = vmatprep.subr.bf16.mxu0 0
        %1114 = vmatpush1.bf16.msra.mxu0 %v890
        %1115 = vmatprep.subr.bf16.mxu0 0
        %1116 = vmatpush1.bf16.msra.mxu0 %v891
        %1117 = vmatprep.subr.bf16.mxu0 0
        %1118 = vmatpush1.bf16.msra.mxu0 %v892
        %1119 = vmatprep.subr.bf16.mxu0 0
        %1120 = vmatpush1.bf16.msra.mxu0 %v893
        %1121 = vmatprep.subr.bf16.mxu0 0
        %1122 = vmatpush1.bf16.msra.mxu0 %v894
        %1123 = vmatprep.subr.bf16.mxu0 0
        %1124 = vmatpush1.bf16.msra.mxu0 %v895
        %1125 = vmatprep.subr.bf16.mxu0 0
        %1126 = vmatpush1.bf16.msra.mxu0 %v896
        %1127 = vmatprep.subr.bf16.mxu0 0
        %1128 = vmatpush1.bf16.msra.mxu0 %v897
        %1129 = vmatprep.subr.bf16.mxu0 0
        %1130 = vmatpush1.bf16.msra.mxu0 %v898
        %1131 = vmatprep.subr.bf16.mxu0 0
        %1132 = vmatpush1.bf16.msra.mxu0 %v899
        %1133 = vmatprep.subr.bf16.mxu0 0
        %1134 = vmatpush1.bf16.msra.mxu0 %v900
        %1135 = vmatprep.subr.bf16.mxu0 0
        %1136 = vmatpush1.bf16.msra.mxu0 %v901
        %1137 = vmatprep.mubr.bf16.mxu0 %v404
        %1138 = vmatmul.mubr.bf16.gmra.mrb[0].mxu0 %v403
        %v1139 = vpop.f32.mrb[0].mxu0
        %v1140 = vadd.f32 %v1099, %v1139
        %v1141 = vpop.f32.mrb[0].mxu0
        %v1142 = vpop.f32.mrb[0].mxu0
        %v1143 = vadd.f32 %v1102, %v1142
        %v1144 = vpop.f32.mrb[0].mxu0
        %1145 = vdwg.mxu0
        %1146 = vmatprep.subr.bf16.mxu0 0
        %1147 = vmatpush1.bf16.msra.mxu0 %v902
        %1148 = vmatprep.subr.bf16.mxu0 0
        %1149 = vmatpush1.bf16.msra.mxu0 %v903
        %1150 = vmatprep.subr.bf16.mxu0 0
        %1151 = vmatpush1.bf16.msra.mxu0 %v904
        %1152 = vmatprep.subr.bf16.mxu0 0
        %1153 = vmatpush1.bf16.msra.mxu0 %v905
        %1154 = vmatprep.subr.bf16.mxu0 0
        %1155 = vmatpush1.bf16.msra.mxu0 %v906
        %1156 = vmatprep.subr.bf16.mxu0 0
        %1157 = vmatpush1.bf16.msra.mxu0 %v907
        %1158 = vmatprep.subr.bf16.mxu0 0
        %1159 = vmatpush1.bf16.msra.mxu0 %v908
        %1160 = vmatprep.subr.bf16.mxu0 0
        %1161 = vmatpush1.bf16.msra.mxu0 %v909
        %1162 = vmatprep.subr.bf16.mxu0 0
        %1163 = vmatpush1.bf16.msra.mxu0 0
        %1164 = vmatprep.subr.bf16.mxu0 0
        %1165 = vmatpush1.bf16.msra.mxu0 0
        %1166 = vmatprep.subr.bf16.mxu0 0
        %1167 = vmatpush1.bf16.msra.mxu0 0
        %1168 = vmatprep.subr.bf16.mxu0 0
        %1169 = vmatpush1.bf16.msra.mxu0 0
        %1170 = vmatprep.subr.bf16.mxu0 0
        %1171 = vmatpush1.bf16.msra.mxu0 0
        %1172 = vmatprep.subr.bf16.mxu0 0
        %1173 = vmatpush1.bf16.msra.mxu0 0
        %1174 = vmatprep.subr.bf16.mxu0 0
        %1175 = vmatpush1.bf16.msra.mxu0 0
        %1176 = vmatprep.subr.bf16.mxu0 0
        %1177 = vmatpush1.bf16.msra.mxu0 0
        %1178 = vmatprep.mubr.bf16.mxu0 0
        %1179 = vmatmul.mubr.bf16.gmra.mrb[0].mxu0 %v405
        %v1180 = vpop.f32.mrb[0].mxu0
        %v1181 = vadd.f32 %v1140, %v1180
        %v1182 = vpop.f32.mrb[0].mxu0
        %v1183 = vpop.f32.mrb[0].mxu0
        %v1184 = vadd.f32 %v1143, %v1183
        %v1185 = vpop.f32.mrb[0].mxu0
        %1186 = vdwg.mxu0
        %v1187 = vld [vmem:[%s2] sm:$0x1]
        %v1189 = vlaneseq
        %v1190 = vshrl.u32 %v1189, 7
        %v1191 = vsub.s32 0, %v1190
        %v1192 = vrot.slane %v1187, %v1191
        %v1194 = vmul.f32 %v1181, %v1192
        %v1195 = vmul.f32 %v1184, %v1192
        %v1196 = vld [vmem:[%s3] sm:$0x1]
        %v1198 = vlaneseq
        %v1199 = vshrl.u32 %v1198, 7
        %v1200 = vsub.s32 0, %v1199
        %v1201 = vrot.slane %v1196, %v1200
        %v1203 = vadd.f32 %v1194, %v1201
        %v1204 = vadd.f32 %v1195, %v1201
        %v1205 = vmax.f32 %v1203, 0.0
        %v1206 = vmax.f32 %v1204, 0.0
        %v1209 = vrot.slane %v1205, 7
        %v1210 = vrot.slane %v1206, 7
        %v1211 = vsel %vm331, %v1209, %v1210
        %v1214 = vsel %vm331, 0.0, %v1209
        %1216 = vrot.lane.b32.xlu0 %v1214, 8
        %v1217 = vpop.permute.xlu0 %1216
        %1218 = vrot.lane.b32.xlu0 %v1211, 8
        %v1219 = vpop.permute.xlu0 %1218
        %v1222 = vsel %vm345, 0.0, %v1217
        %v1223 = vsel %vm345, 0.0, %v1219
        %1224 = vrot.lane.b32.xlu0 %v1214, 120
        %v1225 = vpop.permute.xlu0 %1224
        %1226 = vrot.lane.b32.xlu0 %v1211, 120
        %v1227 = vpop.permute.xlu0 %1226
        %v1230 = vsel %vm354, %v1225, 0.0
        %v1231 = vsel %vm354, %v1227, 0.0
        %1232 = vrot.lane.b32.xlu0 %v1205, 8
        %v1233 = vpop.permute.xlu0 %1232
        %1234 = vrot.lane.b32.xlu0 %v1206, 8
        %v1235 = vpop.permute.xlu0 %1234
        %v1238 = vsel %vm345, 0.0, %v1233
        %v1239 = vsel %vm345, 0.0, %v1235
        %1240 = vrot.lane.b32.xlu0 %v1205, 120
        %v1241 = vpop.permute.xlu0 %1240
        %1242 = vrot.lane.b32.xlu0 %v1206, 120
        %v1243 = vpop.permute.xlu0 %1242
        %v1246 = vsel %vm354, %v1241, 0.0
        %v1247 = vsel %vm354, %v1243, 0.0
        %v1248 = vrot.slane %v1205, 1
        %v1249 = vrot.slane %v1206, 1
        %v1250 = vsel %vm373, %v1248, %v1249
        %v1253 = vsel %vm373, %v1249, 0.0
        %1255 = vrot.lane.b32.xlu0 %v1250, 8
        %v1256 = vpop.permute.xlu0 %1255
        %1257 = vrot.lane.b32.xlu0 %v1253, 8
        %v1258 = vpop.permute.xlu0 %1257
        %v1261 = vsel %vm345, 0.0, %v1256
        %v1262 = vsel %vm345, 0.0, %v1258
        %1263 = vrot.lane.b32.xlu0 %v1250, 120
        %v1264 = vpop.permute.xlu0 %1263
        %1265 = vrot.lane.b32.xlu0 %v1253, 120
        %v1266 = vpop.permute.xlu0 %1265
        %v1269 = vsel %vm354, %v1264, 0.0
        %v1270 = vsel %vm354, %v1266, 0.0
        %v1271 = vpack.c.bf16 %v1223, %v1222
        %v1272 = vpack.c.bf16 %v1211, %v1214
        %v1273 = vpack.c.bf16 %v1231, %v1230
        %v1274 = vpack.c.bf16 %v1239, %v1238
        %v1275 = vpack.c.bf16 %v1206, %v1205
        %v1276 = vpack.c.bf16 %v1247, %v1246
        %v1277 = vpack.c.bf16 %v1262, %v1261
        %v1278 = vpack.c.bf16 %v1253, %v1250
        %v1279 = vpack.c.bf16 %v1270, %v1269
        %v1280 = vld [vmem:[#allocation7] sm:$0xf]
        %v1281 = vld [vmem:[#allocation7 + $0x4] sm:$0xf]
        %v1282 = vld [vmem:[#allocation7 + $0x8] sm:$0xf]
        %v1283 = vld [vmem:[#allocation7 + $0xc] sm:$0xf]
        %v1284 = vld [vmem:[#allocation7 + $0x10] sm:$0xf]
        %v1285 = vld [vmem:[#allocation7 + $0x14] sm:$0xf]
        %v1286 = vld [vmem:[#allocation7 + $0x18] sm:$0xf]
        %v1287 = vld [vmem:[#allocation7 + $0x1c] sm:$0xf]
        %v1288 = vld [vmem:[#allocation7 + $0x20] sm:$0xf]
        %v1289 = vld [vmem:[#allocation7 + $0x24] sm:$0xf]
        %v1290 = vld [vmem:[#allocation7 + $0x28] sm:$0xf]
        %v1291 = vld [vmem:[#allocation7 + $0x2c] sm:$0xf]
        %v1292 = vld [vmem:[#allocation7 + $0x30] sm:$0xf]
        %v1293 = vld [vmem:[#allocation7 + $0x34] sm:$0xf]
        %v1294 = vld [vmem:[#allocation7 + $0x38] sm:$0xf]
        %v1295 = vld [vmem:[#allocation7 + $0x3c] sm:$0xf]
        %v1296 = vld [vmem:[#allocation7 + $0x40] sm:$0xf]
        %v1297 = vld [vmem:[#allocation7 + $0x44] sm:$0xf]
        %v1298 = vld [vmem:[#allocation7 + $0x48] sm:$0xf]
        %v1299 = vld [vmem:[#allocation7 + $0x4c] sm:$0xf]
        %v1300 = vld [vmem:[#allocation7 + $0x50] sm:$0xf]
        %v1301 = vld [vmem:[#allocation7 + $0x54] sm:$0xf]
        %v1302 = vld [vmem:[#allocation7 + $0x58] sm:$0xf]
        %v1303 = vld [vmem:[#allocation7 + $0x5c] sm:$0xf]
        %v1304 = vld [vmem:[#allocation7 + $0x60] sm:$0xf]
        %v1305 = vld [vmem:[#allocation7 + $0x64] sm:$0xf]
        %v1306 = vld [vmem:[#allocation7 + $0x68] sm:$0xf]
        %v1307 = vld [vmem:[#allocation7 + $0x6c] sm:$0xf]
        %v1308 = vld [vmem:[#allocation7 + $0x70] sm:$0xf]
        %v1309 = vld [vmem:[#allocation7 + $0x74] sm:$0xf]
        %v1310 = vld [vmem:[#allocation7 + $0x78] sm:$0xf]
        %v1311 = vld [vmem:[#allocation7 + $0x7c] sm:$0xf]
        %v1312 = vld [vmem:[#allocation7 + $0x80] sm:$0xf]
        %v1313 = vld [vmem:[#allocation7 + $0x84] sm:$0xf]
        %v1314 = vld [vmem:[#allocation7 + $0x88] sm:$0xf]
        %v1315 = vld [vmem:[#allocation7 + $0x8c] sm:$0xf]
        %v1316 = vld [vmem:[#allocation7 + $0x90] sm:$0xf]
        %v1317 = vld [vmem:[#allocation7 + $0x94] sm:$0xf]
        %v1318 = vld [vmem:[#allocation7 + $0x98] sm:$0xf]
        %v1319 = vld [vmem:[#allocation7 + $0x9c] sm:$0xf]
        %v1320 = vld [vmem:[#allocation7 + $0xa0] sm:$0xf]
        %v1321 = vld [vmem:[#allocation7 + $0xa4] sm:$0xf]
        %v1322 = vld [vmem:[#allocation7 + $0xa8] sm:$0xf]
        %v1323 = vld [vmem:[#allocation7 + $0xac] sm:$0xf]
        %v1324 = vld [vmem:[#allocation7 + $0xb0] sm:$0xf]
        %v1325 = vld [vmem:[#allocation7 + $0xb4] sm:$0xf]
        %v1326 = vld [vmem:[#allocation7 + $0xb8] sm:$0xf]
        %v1327 = vld [vmem:[#allocation7 + $0xbc] sm:$0xf]
        %v1328 = vld [vmem:[#allocation7 + $0xc0] sm:$0xf]
        %v1329 = vld [vmem:[#allocation7 + $0xc4] sm:$0xf]
        %v1330 = vld [vmem:[#allocation7 + $0xc8] sm:$0xf]
        %v1331 = vld [vmem:[#allocation7 + $0xcc] sm:$0xf]
        %v1332 = vld [vmem:[#allocation7 + $0xd0] sm:$0xf]
        %v1333 = vld [vmem:[#allocation7 + $0xd4] sm:$0xf]
        %v1334 = vld [vmem:[#allocation7 + $0xd8] sm:$0xf]
        %v1335 = vld [vmem:[#allocation7 + $0xdc] sm:$0xf]
        %v1336 = vld [vmem:[#allocation7 + $0xe0] sm:$0xf]
        %v1337 = vld [vmem:[#allocation7 + $0xe4] sm:$0xf]
        %v1338 = vld [vmem:[#allocation7 + $0xe8] sm:$0xf]
        %v1339 = vld [vmem:[#allocation7 + $0xec] sm:$0xf]
        %v1340 = vld [vmem:[#allocation7 + $0xf0] sm:$0xf]
        %v1341 = vld [vmem:[#allocation7 + $0xf4] sm:$0xf]
        %v1342 = vld [vmem:[#allocation7 + $0xf8] sm:$0xf]
        %v1343 = vld [vmem:[#allocation7 + $0xfc] sm:$0xf]
        %v1344 = vld [vmem:[#allocation7 + $0x100] sm:$0xf]
        %v1345 = vld [vmem:[#allocation7 + $0x104] sm:$0xf]
        %v1346 = vld [vmem:[#allocation7 + $0x108] sm:$0xf]
        %v1347 = vld [vmem:[#allocation7 + $0x10c] sm:$0xf]
        %v1348 = vld [vmem:[#allocation7 + $0x110] sm:$0xf]
        %v1349 = vld [vmem:[#allocation7 + $0x114] sm:$0xf]
        %v1350 = vld [vmem:[#allocation7 + $0x118] sm:$0xf]
        %v1351 = vld [vmem:[#allocation7 + $0x11c] sm:$0xf]
        %v1352 = vld [vmem:[#allocation7 + $0x120] sm:$0xf]
        %v1353 = vld [vmem:[#allocation7 + $0x124] sm:$0xf]
        %v1354 = vld [vmem:[#allocation7 + $0x128] sm:$0xf]
        %v1355 = vld [vmem:[#allocation7 + $0x12c] sm:$0xf]
        %v1356 = vld [vmem:[#allocation7 + $0x130] sm:$0xf]
        %v1357 = vld [vmem:[#allocation7 + $0x134] sm:$0xf]
        %v1358 = vld [vmem:[#allocation7 + $0x138] sm:$0xf]
        %v1359 = vld [vmem:[#allocation7 + $0x13c] sm:$0xf]
        %v1360 = vld [vmem:[#allocation7 + $0x140] sm:$0xf]
        %v1361 = vld [vmem:[#allocation7 + $0x144] sm:$0xf]
        %v1362 = vld [vmem:[#allocation7 + $0x148] sm:$0xf]
        %v1363 = vld [vmem:[#allocation7 + $0x14c] sm:$0xf]
        %v1364 = vld [vmem:[#allocation7 + $0x150] sm:$0xf]
        %v1365 = vld [vmem:[#allocation7 + $0x154] sm:$0xf]
        %v1366 = vld [vmem:[#allocation7 + $0x158] sm:$0xf]
        %v1367 = vld [vmem:[#allocation7 + $0x15c] sm:$0xf]
        %v1368 = vld [vmem:[#allocation7 + $0x160] sm:$0xf]
        %v1369 = vld [vmem:[#allocation7 + $0x164] sm:$0xf]
        %v1370 = vld [vmem:[#allocation7 + $0x168] sm:$0xf]
        %v1371 = vld [vmem:[#allocation7 + $0x16c] sm:$0xf]
        %v1372 = vld [vmem:[#allocation7 + $0x170] sm:$0xf]
        %v1373 = vld [vmem:[#allocation7 + $0x174] sm:$0xf]
        %v1374 = vld [vmem:[#allocation7 + $0x178] sm:$0xf]
        %v1375 = vld [vmem:[#allocation7 + $0x17c] sm:$0xf]
        %v1376 = vld [vmem:[#allocation7 + $0x180] sm:$0xf]
        %v1377 = vld [vmem:[#allocation7 + $0x184] sm:$0xf]
        %v1378 = vld [vmem:[#allocation7 + $0x188] sm:$0xf]
        %v1379 = vld [vmem:[#allocation7 + $0x18c] sm:$0xf]
        %v1380 = vld [vmem:[#allocation7 + $0x190] sm:$0xf]
        %v1381 = vld [vmem:[#allocation7 + $0x194] sm:$0xf]
        %v1382 = vld [vmem:[#allocation7 + $0x198] sm:$0xf]
        %v1383 = vld [vmem:[#allocation7 + $0x19c] sm:$0xf]
        %v1384 = vld [vmem:[#allocation7 + $0x1a0] sm:$0xf]
        %v1385 = vld [vmem:[#allocation7 + $0x1a4] sm:$0xf]
        %v1386 = vld [vmem:[#allocation7 + $0x1a8] sm:$0xf]
        %v1387 = vld [vmem:[#allocation7 + $0x1ac] sm:$0xf]
        %v1388 = vld [vmem:[#allocation7 + $0x1b0] sm:$0xf]
        %v1389 = vld [vmem:[#allocation7 + $0x1b4] sm:$0xf]
        %v1390 = vld [vmem:[#allocation7 + $0x1b8] sm:$0xf]
        %v1391 = vld [vmem:[#allocation7 + $0x1bc] sm:$0xf]
        %v1392 = vld [vmem:[#allocation7 + $0x1c0] sm:$0xf]
        %v1393 = vld [vmem:[#allocation7 + $0x1c4] sm:$0xf]
        %v1394 = vld [vmem:[#allocation7 + $0x1c8] sm:$0xf]
        %v1395 = vld [vmem:[#allocation7 + $0x1cc] sm:$0xf]
        %v1396 = vld [vmem:[#allocation7 + $0x1d0] sm:$0xf]
        %v1397 = vld [vmem:[#allocation7 + $0x1d4] sm:$0xf]
        %v1398 = vld [vmem:[#allocation7 + $0x1d8] sm:$0xf]
        %v1399 = vld [vmem:[#allocation7 + $0x1dc] sm:$0xf]
        %v1400 = vld [vmem:[#allocation7 + $0x1e0] sm:$0xf]
        %v1401 = vld [vmem:[#allocation7 + $0x1e4] sm:$0xf]
        %v1402 = vld [vmem:[#allocation7 + $0x1e8] sm:$0xf]
        %v1403 = vld [vmem:[#allocation7 + $0x1ec] sm:$0xf]
        %v1404 = vld [vmem:[#allocation7 + $0x1f0] sm:$0xf]
        %v1405 = vld [vmem:[#allocation7 + $0x1f4] sm:$0xf]
        %v1406 = vld [vmem:[#allocation7 + $0x1f8] sm:$0xf]
        %v1407 = vld [vmem:[#allocation7 + $0x1fc] sm:$0xf]
        %v1408 = vld [vmem:[#allocation7 + $0x200] sm:$0xf]
        %v1409 = vld [vmem:[#allocation7 + $0x204] sm:$0xf]
        %v1410 = vld [vmem:[#allocation7 + $0x208] sm:$0xf]
        %v1411 = vld [vmem:[#allocation7 + $0x20c] sm:$0xf]
        %v1412 = vld [vmem:[#allocation7 + $0x210] sm:$0xf]
        %v1413 = vld [vmem:[#allocation7 + $0x214] sm:$0xf]
        %v1414 = vld [vmem:[#allocation7 + $0x218] sm:$0xf]
        %v1415 = vld [vmem:[#allocation7 + $0x21c] sm:$0xf]
        %v1416 = vld [vmem:[#allocation7 + $0x220] sm:$0xf]
        %v1417 = vld [vmem:[#allocation7 + $0x224] sm:$0xf]
        %v1418 = vld [vmem:[#allocation7 + $0x228] sm:$0xf]
        %v1419 = vld [vmem:[#allocation7 + $0x22c] sm:$0xf]
        %v1420 = vld [vmem:[#allocation7 + $0x230] sm:$0xf]
        %v1421 = vld [vmem:[#allocation7 + $0x234] sm:$0xf]
        %v1422 = vld [vmem:[#allocation7 + $0x238] sm:$0xf]
        %v1423 = vld [vmem:[#allocation7 + $0x23c] sm:$0xf]
        %v1568 = vunpack.c.l.b16 %v1280
        %v1569 = vunpack.c.l.b16 %v1281
        %v1570 = vunpack.c.l.b16 %v1282
        %v1571 = vunpack.c.l.b16 %v1283
        %v1572 = vunpack.c.l.b16 %v1284
        %v1573 = vunpack.c.l.b16 %v1285
        %v1574 = vunpack.c.l.b16 %v1286
        %v1575 = vunpack.c.l.b16 %v1287
        %v1576 = vunpack.c.l.b16 %v1288
        %v1577 = vunpack.c.l.b16 %v1289
        %v1578 = vunpack.c.l.b16 %v1290
        %v1579 = vunpack.c.l.b16 %v1291
        %v1580 = vunpack.c.l.b16 %v1292
        %v1581 = vunpack.c.l.b16 %v1293
        %v1582 = vunpack.c.l.b16 %v1294
        %v1583 = vunpack.c.l.b16 %v1295
        %v1584 = vunpack.c.l.b16 %v1296
        %v1585 = vunpack.c.l.b16 %v1297
        %v1586 = vunpack.c.l.b16 %v1298
        %v1587 = vunpack.c.l.b16 %v1299
        %v1588 = vunpack.c.l.b16 %v1300
        %v1589 = vunpack.c.l.b16 %v1301
        %v1590 = vunpack.c.l.b16 %v1302
        %v1591 = vunpack.c.l.b16 %v1303
        %v1592 = vunpack.c.l.b16 %v1304
        %v1593 = vunpack.c.l.b16 %v1305
        %v1594 = vunpack.c.l.b16 %v1306
        %v1595 = vunpack.c.l.b16 %v1307
        %v1596 = vunpack.c.l.b16 %v1308
        %v1597 = vunpack.c.l.b16 %v1309
        %v1598 = vunpack.c.l.b16 %v1310
        %v1599 = vunpack.c.l.b16 %v1311
        %v1600 = vunpack.c.l.b16 %v1312
        %v1601 = vunpack.c.l.b16 %v1313
        %v1602 = vunpack.c.l.b16 %v1314
        %v1603 = vunpack.c.l.b16 %v1315
        %v1604 = vunpack.c.l.b16 %v1316
        %v1605 = vunpack.c.l.b16 %v1317
        %v1606 = vunpack.c.l.b16 %v1318
        %v1607 = vunpack.c.l.b16 %v1319
        %v1608 = vunpack.c.l.b16 %v1320
        %v1609 = vunpack.c.l.b16 %v1321
        %v1610 = vunpack.c.l.b16 %v1322
        %v1611 = vunpack.c.l.b16 %v1323
        %v1612 = vunpack.c.l.b16 %v1324
        %v1613 = vunpack.c.l.b16 %v1325
        %v1614 = vunpack.c.l.b16 %v1326
        %v1615 = vunpack.c.l.b16 %v1327
        %v1616 = vunpack.c.l.b16 %v1328
        %v1617 = vunpack.c.l.b16 %v1329
        %v1618 = vunpack.c.l.b16 %v1330
        %v1619 = vunpack.c.l.b16 %v1331
        %v1620 = vunpack.c.l.b16 %v1332
        %v1621 = vunpack.c.l.b16 %v1333
        %v1622 = vunpack.c.l.b16 %v1334
        %v1623 = vunpack.c.l.b16 %v1335
        %v1624 = vunpack.c.l.b16 %v1336
        %v1625 = vunpack.c.l.b16 %v1337
        %v1626 = vunpack.c.l.b16 %v1338
        %v1627 = vunpack.c.l.b16 %v1339
        %v1628 = vunpack.c.l.b16 %v1340
        %v1629 = vunpack.c.l.b16 %v1341
        %v1630 = vunpack.c.l.b16 %v1342
        %v1631 = vunpack.c.l.b16 %v1343
        %v1632 = vunpack.c.l.b16 %v1344
        %v1633 = vunpack.c.l.b16 %v1345
        %v1634 = vunpack.c.l.b16 %v1346
        %v1635 = vunpack.c.l.b16 %v1347
        %v1636 = vunpack.c.l.b16 %v1348
        %v1637 = vunpack.c.l.b16 %v1349
        %v1638 = vunpack.c.l.b16 %v1350
        %v1639 = vunpack.c.l.b16 %v1351
        %v1640 = vunpack.c.l.b16 %v1352
        %v1641 = vunpack.c.l.b16 %v1353
        %v1642 = vunpack.c.l.b16 %v1354
        %v1643 = vunpack.c.l.b16 %v1355
        %v1644 = vunpack.c.l.b16 %v1356
        %v1645 = vunpack.c.l.b16 %v1357
        %v1646 = vunpack.c.l.b16 %v1358
        %v1647 = vunpack.c.l.b16 %v1359
        %v1648 = vunpack.c.l.b16 %v1360
        %v1649 = vunpack.c.l.b16 %v1361
        %v1650 = vunpack.c.l.b16 %v1362
        %v1651 = vunpack.c.l.b16 %v1363
        %v1652 = vunpack.c.l.b16 %v1364
        %v1653 = vunpack.c.l.b16 %v1365
        %v1654 = vunpack.c.l.b16 %v1366
        %v1655 = vunpack.c.l.b16 %v1367
        %v1656 = vunpack.c.l.b16 %v1368
        %v1657 = vunpack.c.l.b16 %v1369
        %v1658 = vunpack.c.l.b16 %v1370
        %v1659 = vunpack.c.l.b16 %v1371
        %v1660 = vunpack.c.l.b16 %v1372
        %v1661 = vunpack.c.l.b16 %v1373
        %v1662 = vunpack.c.l.b16 %v1374
        %v1663 = vunpack.c.l.b16 %v1375
        %v1664 = vunpack.c.l.b16 %v1376
        %v1665 = vunpack.c.l.b16 %v1377
        %v1666 = vunpack.c.l.b16 %v1378
        %v1667 = vunpack.c.l.b16 %v1379
        %v1668 = vunpack.c.l.b16 %v1380
        %v1669 = vunpack.c.l.b16 %v1381
        %v1670 = vunpack.c.l.b16 %v1382
        %v1671 = vunpack.c.l.b16 %v1383
        %v1672 = vunpack.c.l.b16 %v1384
        %v1673 = vunpack.c.l.b16 %v1385
        %v1674 = vunpack.c.l.b16 %v1386
        %v1675 = vunpack.c.l.b16 %v1387
        %v1676 = vunpack.c.l.b16 %v1388
        %v1677 = vunpack.c.l.b16 %v1389
        %v1678 = vunpack.c.l.b16 %v1390
        %v1679 = vunpack.c.l.b16 %v1391
        %v1680 = vunpack.c.l.b16 %v1392
        %v1681 = vunpack.c.l.b16 %v1393
        %v1682 = vunpack.c.l.b16 %v1394
        %v1683 = vunpack.c.l.b16 %v1395
        %v1684 = vunpack.c.l.b16 %v1396
        %v1685 = vunpack.c.l.b16 %v1397
        %v1686 = vunpack.c.l.b16 %v1398
        %v1687 = vunpack.c.l.b16 %v1399
        %v1688 = vunpack.c.l.b16 %v1400
        %v1689 = vunpack.c.l.b16 %v1401
        %v1690 = vunpack.c.l.b16 %v1402
        %v1691 = vunpack.c.l.b16 %v1403
        %v1692 = vunpack.c.l.b16 %v1404
        %v1693 = vunpack.c.l.b16 %v1405
        %v1694 = vunpack.c.l.b16 %v1406
        %v1695 = vunpack.c.l.b16 %v1407
        %v1696 = vunpack.c.l.b16 %v1408
        %v1697 = vunpack.c.l.b16 %v1409
        %v1698 = vunpack.c.l.b16 %v1410
        %v1699 = vunpack.c.l.b16 %v1411
        %v1700 = vunpack.c.l.b16 %v1412
        %v1701 = vunpack.c.l.b16 %v1413
        %v1702 = vunpack.c.l.b16 %v1414
        %v1703 = vunpack.c.l.b16 %v1415
        %v1704 = vunpack.c.l.b16 %v1416
        %v1705 = vunpack.c.l.b16 %v1417
        %v1706 = vunpack.c.l.b16 %v1418
        %v1707 = vunpack.c.l.b16 %v1419
        %v1708 = vunpack.c.l.b16 %v1420
        %v1709 = vunpack.c.l.b16 %v1421
        %v1710 = vunpack.c.l.b16 %v1422
        %v1711 = vunpack.c.l.b16 %v1423
        %v1712 = vpack.c.b16 %v1569, %v1568
        %v1713 = vpack.c.b16 %v1571, %v1570
        %v1714 = vpack.c.b16 %v1573, %v1572
        %v1715 = vpack.c.b16 %v1575, %v1574
        %v1716 = vpack.c.b16 %v1577, %v1576
        %v1717 = vpack.c.b16 %v1579, %v1578
        %v1718 = vpack.c.b16 %v1581, %v1580
        %v1719 = vpack.c.b16 %v1583, %v1582
        %v1720 = vpack.c.b16 %v1585, %v1584
        %v1721 = vpack.c.b16 %v1587, %v1586
        %v1722 = vpack.c.b16 %v1589, %v1588
        %v1723 = vpack.c.b16 %v1591, %v1590
        %v1724 = vpack.c.b16 %v1593, %v1592
        %v1725 = vpack.c.b16 %v1595, %v1594
        %v1726 = vpack.c.b16 %v1597, %v1596
        %v1727 = vpack.c.b16 %v1599, %v1598
        %v1728 = vpack.c.b16 %v1601, %v1600
        %v1729 = vpack.c.b16 %v1603, %v1602
        %v1730 = vpack.c.b16 %v1605, %v1604
        %v1731 = vpack.c.b16 %v1607, %v1606
        %v1732 = vpack.c.b16 %v1609, %v1608
        %v1733 = vpack.c.b16 %v1611, %v1610
        %v1734 = vpack.c.b16 %v1613, %v1612
        %v1735 = vpack.c.b16 %v1615, %v1614
        %v1736 = vpack.c.b16 %v1617, %v1616
        %v1737 = vpack.c.b16 %v1619, %v1618
        %v1738 = vpack.c.b16 %v1621, %v1620
        %v1739 = vpack.c.b16 %v1623, %v1622
        %v1740 = vpack.c.b16 %v1625, %v1624
        %v1741 = vpack.c.b16 %v1627, %v1626
        %v1742 = vpack.c.b16 %v1629, %v1628
        %v1743 = vpack.c.b16 %v1631, %v1630
        %v1744 = vpack.c.b16 %v1633, %v1632
        %v1745 = vpack.c.b16 %v1635, %v1634
        %v1746 = vpack.c.b16 %v1637, %v1636
        %v1747 = vpack.c.b16 %v1639, %v1638
        %v1748 = vpack.c.b16 %v1641, %v1640
        %v1749 = vpack.c.b16 %v1643, %v1642
        %v1750 = vpack.c.b16 %v1645, %v1644
        %v1751 = vpack.c.b16 %v1647, %v1646
        %v1752 = vpack.c.b16 %v1649, %v1648
        %v1753 = vpack.c.b16 %v1651, %v1650
        %v1754 = vpack.c.b16 %v1653, %v1652
        %v1755 = vpack.c.b16 %v1655, %v1654
        %v1756 = vpack.c.b16 %v1657, %v1656
        %v1757 = vpack.c.b16 %v1659, %v1658
        %v1758 = vpack.c.b16 %v1661, %v1660
        %v1759 = vpack.c.b16 %v1663, %v1662
        %v1760 = vpack.c.b16 %v1665, %v1664
        %v1761 = vpack.c.b16 %v1667, %v1666
        %v1762 = vpack.c.b16 %v1669, %v1668
        %v1763 = vpack.c.b16 %v1671, %v1670
        %v1764 = vpack.c.b16 %v1673, %v1672
        %v1765 = vpack.c.b16 %v1675, %v1674
        %v1766 = vpack.c.b16 %v1677, %v1676
        %v1767 = vpack.c.b16 %v1679, %v1678
        %v1768 = vpack.c.b16 %v1681, %v1680
        %v1769 = vpack.c.b16 %v1683, %v1682
        %v1770 = vpack.c.b16 %v1685, %v1684
        %v1771 = vpack.c.b16 %v1687, %v1686
        %v1772 = vpack.c.b16 %v1689, %v1688
        %v1773 = vpack.c.b16 %v1691, %v1690
        %v1774 = vpack.c.b16 %v1693, %v1692
        %v1775 = vpack.c.b16 %v1695, %v1694
        %v1776 = vpack.c.b16 %v1697, %v1696
        %v1777 = vpack.c.b16 %v1699, %v1698
        %v1778 = vpack.c.b16 %v1701, %v1700
        %v1779 = vpack.c.b16 %v1703, %v1702
        %v1780 = vpack.c.b16 %v1705, %v1704
        %v1781 = vpack.c.b16 %v1707, %v1706
        %v1782 = vpack.c.b16 %v1709, %v1708
        %v1783 = vpack.c.b16 %v1711, %v1710
        %1856 = vmatprep.subr.bf16.mxu0 0
        %1857 = vmatpush1.bf16.msra.mxu0 %v1712
        %1858 = vmatprep.subr.bf16.mxu0 0
        %1859 = vmatpush1.bf16.msra.mxu0 %v1713
        %1860 = vmatprep.subr.bf16.mxu0 0
        %1861 = vmatpush1.bf16.msra.mxu0 %v1714
        %1862 = vmatprep.subr.bf16.mxu0 0
        %1863 = vmatpush1.bf16.msra.mxu0 %v1715
        %1864 = vmatprep.subr.bf16.mxu0 0
        %1865 = vmatpush1.bf16.msra.mxu0 %v1716
        %1866 = vmatprep.subr.bf16.mxu0 0
        %1867 = vmatpush1.bf16.msra.mxu0 %v1717
        %1868 = vmatprep.subr.bf16.mxu0 0
        %1869 = vmatpush1.bf16.msra.mxu0 %v1718
        %1870 = vmatprep.subr.bf16.mxu0 0
        %1871 = vmatpush1.bf16.msra.mxu0 %v1719
        %1872 = vmatprep.subr.bf16.mxu0 0
        %1873 = vmatpush1.bf16.msra.mxu0 %v1720
        %1874 = vmatprep.subr.bf16.mxu0 0
        %1875 = vmatpush1.bf16.msra.mxu0 %v1721
        %1876 = vmatprep.subr.bf16.mxu0 0
        %1877 = vmatpush1.bf16.msra.mxu0 %v1722
        %1878 = vmatprep.subr.bf16.mxu0 0
        %1879 = vmatpush1.bf16.msra.mxu0 %v1723
        %1880 = vmatprep.subr.bf16.mxu0 0
        %1881 = vmatpush1.bf16.msra.mxu0 %v1724
        %1882 = vmatprep.subr.bf16.mxu0 0
        %1883 = vmatpush1.bf16.msra.mxu0 %v1725
        %1884 = vmatprep.subr.bf16.mxu0 0
        %1885 = vmatpush1.bf16.msra.mxu0 %v1726
        %1886 = vmatprep.subr.bf16.mxu0 0
        %1887 = vmatpush1.bf16.msra.mxu0 %v1727
        %1888 = vmatprep.mubr.bf16.mxu0 %v1272
        %1889 = vmatmul.mubr.bf16.gmra.mrb[0].mxu0 %v1271
        %v1890 = vpop.f32.mrb[0].mxu0
        %v1891 = vadd.f32 0.0, %v1890
        %v1892 = vpop.f32.mrb[0].mxu0
        %v1893 = vpop.f32.mrb[0].mxu0
        %v1894 = vadd.f32 0.0, %v1893
        %v1895 = vpop.f32.mrb[0].mxu0
        %1896 = vdwg.mxu0
        %1897 = vmatprep.subr.bf16.mxu0 0
        %1898 = vmatpush1.bf16.msra.mxu0 %v1728
        %1899 = vmatprep.subr.bf16.mxu0 0
        %1900 = vmatpush1.bf16.msra.mxu0 %v1729
        %1901 = vmatprep.subr.bf16.mxu0 0
        %1902 = vmatpush1.bf16.msra.mxu0 %v1730
        %1903 = vmatprep.subr.bf16.mxu0 0
        %1904 = vmatpush1.bf16.msra.mxu0 %v1731
        %1905 = vmatprep.subr.bf16.mxu0 0
        %1906 = vmatpush1.bf16.msra.mxu0 %v1732
        %1907 = vmatprep.subr.bf16.mxu0 0
        %1908 = vmatpush1.bf16.msra.mxu0 %v1733
        %1909 = vmatprep.subr.bf16.mxu0 0
        %1910 = vmatpush1.bf16.msra.mxu0 %v1734
        %1911 = vmatprep.subr.bf16.mxu0 0
        %1912 = vmatpush1.bf16.msra.mxu0 %v1735
        %1913 = vmatprep.subr.bf16.mxu0 0
        %1914 = vmatpush1.bf16.msra.mxu0 %v1736
        %1915 = vmatprep.subr.bf16.mxu0 0
        %1916 = vmatpush1.bf16.msra.mxu0 %v1737
        %1917 = vmatprep.subr.bf16.mxu0 0
        %1918 = vmatpush1.bf16.msra.mxu0 %v1738
        %1919 = vmatprep.subr.bf16.mxu0 0
        %1920 = vmatpush1.bf16.msra.mxu0 %v1739
        %1921 = vmatprep.subr.bf16.mxu0 0
        %1922 = vmatpush1.bf16.msra.mxu0 %v1740
        %1923 = vmatprep.subr.bf16.mxu0 0
        %1924 = vmatpush1.bf16.msra.mxu0 %v1741
        %1925 = vmatprep.subr.bf16.mxu0 0
        %1926 = vmatpush1.bf16.msra.mxu0 %v1742
        %1927 = vmatprep.subr.bf16.mxu0 0
        %1928 = vmatpush1.bf16.msra.mxu0 %v1743
        %1929 = vmatprep.mubr.bf16.mxu0 %v1274
        %1930 = vmatmul.mubr.bf16.gmra.mrb[0].mxu0 %v1273
        %v1931 = vpop.f32.mrb[0].mxu0
        %v1932 = vadd.f32 %v1891, %v1931
        %v1933 = vpop.f32.mrb[0].mxu0
        %v1934 = vpop.f32.mrb[0].mxu0
        %v1935 = vadd.f32 %v1894, %v1934
        %v1936 = vpop.f32.mrb[0].mxu0
        %1937 = vdwg.mxu0
        %1938 = vmatprep.subr.bf16.mxu0 0
        %1939 = vmatpush1.bf16.msra.mxu0 %v1744
        %1940 = vmatprep.subr.bf16.mxu0 0
        %1941 = vmatpush1.bf16.msra.mxu0 %v1745
        %1942 = vmatprep.subr.bf16.mxu0 0
        %1943 = vmatpush1.bf16.msra.mxu0 %v1746
        %1944 = vmatprep.subr.bf16.mxu0 0
        %1945 = vmatpush1.bf16.msra.mxu0 %v1747
        %1946 = vmatprep.subr.bf16.mxu0 0
        %1947 = vmatpush1.bf16.msra.mxu0 %v1748
        %1948 = vmatprep.subr.bf16.mxu0 0
        %1949 = vmatpush1.bf16.msra.mxu0 %v1749
        %1950 = vmatprep.subr.bf16.mxu0 0
        %1951 = vmatpush1.bf16.msra.mxu0 %v1750
        %1952 = vmatprep.subr.bf16.mxu0 0
        %1953 = vmatpush1.bf16.msra.mxu0 %v1751
        %1954 = vmatprep.subr.bf16.mxu0 0
        %1955 = vmatpush1.bf16.msra.mxu0 %v1752
        %1956 = vmatprep.subr.bf16.mxu0 0
        %1957 = vmatpush1.bf16.msra.mxu0 %v1753
        %1958 = vmatprep.subr.bf16.mxu0 0
        %1959 = vmatpush1.bf16.msra.mxu0 %v1754
        %1960 = vmatprep.subr.bf16.mxu0 0
        %1961 = vmatpush1.bf16.msra.mxu0 %v1755
        %1962 = vmatprep.subr.bf16.mxu0 0
        %1963 = vmatpush1.bf16.msra.mxu0 %v1756
        %1964 = vmatprep.subr.bf16.mxu0 0
        %1965 = vmatpush1.bf16.msra.mxu0 %v1757
        %1966 = vmatprep.subr.bf16.mxu0 0
        %1967 = vmatpush1.bf16.msra.mxu0 %v1758
        %1968 = vmatprep.subr.bf16.mxu0 0
        %1969 = vmatpush1.bf16.msra.mxu0 %v1759
        %1970 = vmatprep.mubr.bf16.mxu0 %v1276
        %1971 = vmatmul.mubr.bf16.gmra.mrb[0].mxu0 %v1275
        %v1972 = vpop.f32.mrb[0].mxu0
        %v1973 = vadd.f32 %v1932, %v1972
        %v1974 = vpop.f32.mrb[0].mxu0
        %v1975 = vpop.f32.mrb[0].mxu0
        %v1976 = vadd.f32 %v1935, %v1975
        %v1977 = vpop.f32.mrb[0].mxu0
        %1978 = vdwg.mxu0
        %1979 = vmatprep.subr.bf16.mxu0 0
        %1980 = vmatpush1.bf16.msra.mxu0 %v1760
        %1981 = vmatprep.subr.bf16.mxu0 0
        %1982 = vmatpush1.bf16.msra.mxu0 %v1761
        %1983 = vmatprep.subr.bf16.mxu0 0
        %1984 = vmatpush1.bf16.msra.mxu0 %v1762
        %1985 = vmatprep.subr.bf16.mxu0 0
        %1986 = vmatpush1.bf16.msra.mxu0 %v1763
        %1987 = vmatprep.subr.bf16.mxu0 0
        %1988 = vmatpush1.bf16.msra.mxu0 %v1764
        %1989 = vmatprep.subr.bf16.mxu0 0
        %1990 = vmatpush1.bf16.msra.mxu0 %v1765
        %1991 = vmatprep.subr.bf16.mxu0 0
        %1992 = vmatpush1.bf16.msra.mxu0 %v1766
        %1993 = vmatprep.subr.bf16.mxu0 0
        %1994 = vmatpush1.bf16.msra.mxu0 %v1767
        %1995 = vmatprep.subr.bf16.mxu0 0
        %1996 = vmatpush1.bf16.msra.mxu0 %v1768
        %1997 = vmatprep.subr.bf16.mxu0 0
        %1998 = vmatpush1.bf16.msra.mxu0 %v1769
        %1999 = vmatprep.subr.bf16.mxu0 0
        %2000 = vmatpush1.bf16.msra.mxu0 %v1770
        %2001 = vmatprep.subr.bf16.mxu0 0
        %2002 = vmatpush1.bf16.msra.mxu0 %v1771
        %2003 = vmatprep.subr.bf16.mxu0 0
        %2004 = vmatpush1.bf16.msra.mxu0 %v1772
        %2005 = vmatprep.subr.bf16.mxu0 0
        %2006 = vmatpush1.bf16.msra.mxu0 %v1773
        %2007 = vmatprep.subr.bf16.mxu0 0
        %2008 = vmatpush1.bf16.msra.mxu0 %v1774
        %2009 = vmatprep.subr.bf16.mxu0 0
        %2010 = vmatpush1.bf16.msra.mxu0 %v1775
        %2011 = vmatprep.mubr.bf16.mxu0 %v1278
        %2012 = vmatmul.mubr.bf16.gmra.mrb[0].mxu0 %v1277
        %v2013 = vpop.f32.mrb[0].mxu0
        %v2014 = vadd.f32 %v1973, %v2013
        %v2015 = vpop.f32.mrb[0].mxu0
        %v2016 = vpop.f32.mrb[0].mxu0
        %v2017 = vadd.f32 %v1976, %v2016
        %v2018 = vpop.f32.mrb[0].mxu0
        %2019 = vdwg.mxu0
        %2020 = vmatprep.subr.bf16.mxu0 0
        %2021 = vmatpush1.bf16.msra.mxu0 %v1776
        %2022 = vmatprep.subr.bf16.mxu0 0
        %2023 = vmatpush1.bf16.msra.mxu0 %v1777
        %2024 = vmatprep.subr.bf16.mxu0 0
        %2025 = vmatpush1.bf16.msra.mxu0 %v1778
        %2026 = vmatprep.subr.bf16.mxu0 0
        %2027 = vmatpush1.bf16.msra.mxu0 %v1779
        %2028 = vmatprep.subr.bf16.mxu0 0
        %2029 = vmatpush1.bf16.msra.mxu0 %v1780
        %2030 = vmatprep.subr.bf16.mxu0 0
        %2031 = vmatpush1.bf16.msra.mxu0 %v1781
        %2032 = vmatprep.subr.bf16.mxu0 0
        %2033 = vmatpush1.bf16.msra.mxu0 %v1782
        %2034 = vmatprep.subr.bf16.mxu0 0
        %2035 = vmatpush1.bf16.msra.mxu0 %v1783
        %2036 = vmatprep.subr.bf16.mxu0 0
        %2037 = vmatpush1.bf16.msra.mxu0 0
        %2038 = vmatprep.subr.bf16.mxu0 0
        %2039 = vmatpush1.bf16.msra.mxu0 0
        %2040 = vmatprep.subr.bf16.mxu0 0
        %2041 = vmatpush1.bf16.msra.mxu0 0
        %2042 = vmatprep.subr.bf16.mxu0 0
        %2043 = vmatpush1.bf16.msra.mxu0 0
        %2044 = vmatprep.subr.bf16.mxu0 0
        %2045 = vmatpush1.bf16.msra.mxu0 0
        %2046 = vmatprep.subr.bf16.mxu0 0
        %2047 = vmatpush1.bf16.msra.mxu0 0
        %2048 = vmatprep.subr.bf16.mxu0 0
        %2049 = vmatpush1.bf16.msra.mxu0 0
        %2050 = vmatprep.subr.bf16.mxu0 0
        %2051 = vmatpush1.bf16.msra.mxu0 0
        %2052 = vmatprep.mubr.bf16.mxu0 0
        %2053 = vmatmul.mubr.bf16.gmra.mrb[0].mxu0 %v1279
        %v2054 = vpop.f32.mrb[0].mxu0
        %v2055 = vadd.f32 %v2014, %v2054
        %v2056 = vpop.f32.mrb[0].mxu0
        %v2057 = vpop.f32.mrb[0].mxu0
        %v2058 = vadd.f32 %v2017, %v2057
        %v2059 = vpop.f32.mrb[0].mxu0
        %2060 = vdwg.mxu0
        %v2061 = vld [vmem:[%s5] sm:$0x1]
        %v2063 = vlaneseq
        %v2064 = vshrl.u32 %v2063, 7
        %v2065 = vsub.s32 0, %v2064
        %v2066 = vrot.slane %v2061, %v2065
        %v2068 = vmul.f32 %v2055, %v2066
        %v2069 = vmul.f32 %v2058, %v2066
        %v2070 = vld [vmem:[%s6] sm:$0x1]
        %v2072 = vlaneseq
        %v2073 = vshrl.u32 %v2072, 7
        %v2074 = vsub.s32 0, %v2073
        %v2075 = vrot.slane %v2070, %v2074
        %v2077 = vadd.f32 %v2068, %v2075
        %v2078 = vadd.f32 %v2069, %v2075
        %v2079 = vadd.f32 %v2077, %v327
        %v2080 = vadd.f32 %v2078, %v328
        %v2081 = vmax.f32 %v2079, 0.0
        %v2082 = vmax.f32 %v2080, 0.0
        %2083 = vst [vmem:[%s325] sm:$0xff] %v2081
        %2084 = vst [vmem:[%s325 + $0x8] sm:$0xff] %v2082
        %s2085 = sand.u32 %s185, 1
        %s2086 = scalar_lea.sflag [#allocation4], %s2085
        %s2087 = sand.u32 %s185, 1
        %s2088 = smul.addr %s2087, 16
        %s2089 = scalar_lea.vmem [#allocation8], %s2088
        // Predicated region
        $region61: #{tpu_custom_call.1} parent=47 // pred_check
          %p2090 = pneg %p195
        $region62: #{tpu_custom_call.1} parent=47 // pred_check_branch
          %2092 = sbr.rel (%p2090) target = $region64
        $region63: #{tpu_custom_call.1} parent=47 // pred_region
          %s2094 = ssub.s32 256, 256
          %2095 = vsyncadd %s2086, %s2094
          %s2096 = smul.addr %s25, 2
          %s2097 = smul.addr %s2096, 128
          %s2098 = scalar_lea.hbm %s7, %s2097
          %s2099 = sshll.u32 %s2089, 4
          %s2100 = int_to_ptr.vmem [resolvable:$true] %s2099
          %2105 = dma.vmem_to_hbm [thread:$0]  %s2100, 256, %s2098, %s2086, 128, 128, 8
        $region64: #{tpu_custom_call.1} parent=47 // pred_fallthru
          _
      $region48: #{tpu_custom_call.1} parent=5 // pred_fallthru
        _
      %p2106 = scmp.le.s32.totalorder 2, %s20
      // Predicated region
      $region65: #{tpu_custom_call.1} parent=5 // pred_check
        %p2107 = pneg %p2106
      $region66: #{tpu_custom_call.1} parent=5 // pred_check_branch
        %2109 = sbr.rel (%p2107) target = $region68
      $region67: #{tpu_custom_call.1} parent=5 // pred_region
        %s2110 = ssub.s32 %s20, 2
        // Predicated region
        $region69: #{tpu_custom_call.1} parent=67 // pred_check
          %p2111 = pneg %p201
        $region70: #{tpu_custom_call.1} parent=67 // pred_check_branch
          %2113 = sbr.rel (%p2111) target = $region72
        $region71: #{tpu_custom_call.1} parent=67 // pred_region
          %s2114 = sand.u32 %s186, 1
          %s2115 = scalar_lea.sflag [#allocation4], %s2114
          %s2116 = sand.u32 %s186, 1
          %s2117 = smul.addr %s2116, 16
          %s2118 = scalar_lea.vmem [#allocation8], %s2117
          %2119 = dma.done %s2115, 256
        $region72: #{tpu_custom_call.1} parent=67 // pred_fallthru
          _
      $region68: #{tpu_custom_call.1} parent=5 // pred_fallthru
        _
    $region6: #{tpu_custom_call.1} parent=1 // loop_footer
      %s24 = sadd.s32 1, %s20
    $region7: #{tpu_custom_call.1} parent=1 // loop_footer_branch
      %19 = sbr.rel target = $region3
    $region8: #{tpu_custom_call.1} parent=1 // loop_exit
      _
    %2120 = vsyncpa [#allocation3], 1
    %s2121 = scalar_lea.sflag [#allocation3], 1
    %2122 = vsyncpa %s2121, 1
    %2123 = vsyncpa [#allocation6], 1
    %2124 = vsyncpa [#allocation4], 1
    %s2125 = scalar_lea.sflag [#allocation4], 1
    %2126 = vsyncpa %s2125, 1

</llo_original>
